<compile_context>
chip_gen: v5e
topology: v5e:2x2
jax: 0.10.0
libtpu: 0.0.40
codegen_flags: <defaults>
</compile_context>

<pallas_src>
import functools

import jax
import jax.numpy as jnp
from jax.experimental import pallas as pl
from jax.experimental.pallas import tpu as pltpu


def _round_up(x, m):
    return ((x + m - 1) // m) * m


def _choose_tile_h(H_out, W_out, Wp, Cp, Cop, in_itemsize, stride, dilation,
                   KH, budget_bytes=4 * 1024 * 1024):
    """Pick an output-row tile height from a VMEM byte budget."""
    in_row = stride * Wp * Cp * in_itemsize * 2       # double-buffered slab
    out_row = W_out * Cop * in_itemsize * 2           # double-buffered output
    acc_row = W_out * Cp * 4                          # f32 accumulator
    per_row = max(1, in_row + out_row + acc_row)
    th = max(1, budget_bytes // per_row)
    th = min(int(th), H_out)
    if th >= 8:
        th = (th // 8) * 8                            # sublane-friendly
    return int(th)


def _sepconv_kernel(x_hbm, wdw_ref, wpw_ref, o_ref, xbuf, sem, *,
                    TH, W_out, KH, KW, stride, dilation, rows_in, grid_h,
                    mxu_dtype):
    """Fused depthwise + pointwise conv for one (batch, row-tile) grid step.

    x_hbm  : (N, Hp_pad, Wp, Cp)   full activation, left in HBM (pl.ANY)
    wdw_ref: (KH, KW, Cp)          depthwise weights (VMEM, resident)
    wpw_ref: (Cp, Cop)             pointwise weights (VMEM, resident)
    o_ref  : (1, TH, W_out, Cop)   output row-tile (lane-dense Cop)
    xbuf   : (2, rows_in, Wp, Cp)  double-buffered input slab (VMEM scratch)
    sem    : DMA semaphores, one per slot
    """
    n = pl.program_id(0)
    h = pl.program_id(1)
    slot = h % 2
    Cp = xbuf.shape[-1]
    Cop = wpw_ref.shape[-1]

    def slab_copy(nn, hh, sl):
        row0 = hh * (TH * stride)
        if (TH * stride) % 8 == 0:
            row0 = pl.multiple_of(row0, 8)
        return pltpu.make_async_copy(
            x_hbm.at[nn, pl.ds(row0, rows_in)], xbuf.at[sl], sem.at[sl])

    # Prime the pipeline at the first row-tile of this image.
    @pl.when(h == 0)
    def _():
        slab_copy(n, 0, 0).start()

    # Wait for the slab belonging to this step (started at h-1 or by the prime).
    slab_copy(n, h, slot).wait()

    # Prefetch the next row-tile's slab while we compute on the current one.
    @pl.when(h + 1 < grid_h)
    def _():
        slab_copy(n, h + 1, 1 - slot).start()

    xcur = xbuf.at[slot]                               # (rows_in, Wp, Cp)
    wdw = wdw_ref[...].astype(jnp.float32)             # tiny, hoisted once

    # --- depthwise conv (groups == C): per-channel spatial MAC on the VPU ---
    acc = jnp.zeros((TH, W_out, Cp), jnp.float32)
    if stride == 1:
        # Contiguous per-tap windows read straight from the VMEM ref.
        for kh in range(KH):
            for kw in range(KW):
                patch = xcur[pl.ds(kh * dilation, TH),
                             pl.ds(kw * dilation, W_out), :]
                acc = acc + patch.astype(jnp.float32) * wdw[kh, kw, :]
    else:
        # TODO(synk): stride > 1 materializes the slab and uses strided
        # value-slicing per tap; a strided DMA / single subsample would avoid
        # the per-tap relayout on the XLU.
        xval = xcur[...]
        for kh in range(KH):
            for kw in range(KW):
                h0 = kh * dilation
                w0 = kw * dilation
                patch = xval[h0:h0 + (TH - 1) * stride + 1:stride,
                             w0:w0 + (W_out - 1) * stride + 1:stride, :]
                acc = acc + patch.astype(jnp.float32) * wdw[kh, kw, :]

    # --- pointwise 1x1 conv: lane-dense (TH*W_out, Cp) @ (Cp, Cop) on the MXU ---
    a2 = acc.reshape(TH * W_out, Cp).astype(mxu_dtype)
    w2 = wpw_ref[...].astype(mxu_dtype)
    y = jnp.dot(a2, w2, preferred_element_type=jnp.float32)
    o_ref[0] = y.reshape(TH, W_out, Cop).astype(o_ref.dtype)


def separable_conv2d(x_nchw, w_depthwise, w_pointwise, *,
                     stride=1, padding=0, dilation=1, tile_h=None):
    """x_nchw:       (N, C, H, W)              PyTorch layout
       w_depthwise:  (C, 1, KH, KW)            nn.Conv2d(groups=C) weight
       w_pointwise:  (C_out, C, 1, 1)          1x1 conv weight
       returns:      (N, C_out, H_out, W_out)  PyTorch layout
    """
    N, C, H, W = x_nchw.shape
    KH, KW = w_depthwise.shape[2], w_depthwise.shape[3]
    C_out = w_pointwise.shape[0]

    H_out = (H + 2 * padding - dilation * (KH - 1) - 1) // stride + 1
    W_out = (W + 2 * padding - dilation * (KW - 1) - 1) // stride + 1

    # Lane-dense channel padding (multiples of 128) for the depthwise taps,
    # the MXU contraction (K = Cp), and unmasked output stores (N = Cop).
    Cp = _round_up(C, 128)
    Cop = _round_up(C_out, 128)

    itemsize = jnp.dtype(x_nchw.dtype).itemsize
    Wp = W + 2 * padding

    if tile_h is None:
        tile_h = _choose_tile_h(H_out, W_out, Wp, Cp, Cop, itemsize,
                                stride, dilation, KH)
    TH = max(1, min(int(tile_h), H_out))
    grid_h = int(pl.cdiv(H_out, TH))
    H_out_pad = grid_h * TH

    # Input rows needed per row-tile (includes depthwise halo).
    rows_in = (TH - 1) * stride + (KH - 1) * dilation + 1
    Hp = H + 2 * padding
    Hp_needed = (H_out_pad - 1) * stride + (KH - 1) * dilation + 1
    pad_bottom = padding + max(0, Hp_needed - Hp)

    # NCHW -> NHWC, zero-pad spatially and pad channels to Cp (boundary glue).
    x = jnp.transpose(x_nchw, (0, 2, 3, 1))
    x = jnp.pad(x, ((0, 0), (padding, pad_bottom), (padding, padding),
                    (0, Cp - C)))
    Hp_pad, Wp = x.shape[1], x.shape[2]

    wdw = jnp.transpose(w_depthwise[:, 0, :, :], (1, 2, 0))    # (KH, KW, C)
    wdw = jnp.pad(wdw, ((0, 0), (0, 0), (0, Cp - C)))
    wpw = jnp.transpose(w_pointwise[:, :, 0, 0], (1, 0))       # (C, C_out)
    wpw = jnp.pad(wpw, ((0, Cp - C), (0, Cop - C_out)))

    mxu_dtype = (jnp.bfloat16 if jnp.dtype(x_nchw.dtype) == jnp.bfloat16
                 else jnp.float32)

    kernel = functools.partial(
        _sepconv_kernel,
        TH=TH, W_out=W_out, KH=KH, KW=KW, stride=stride, dilation=dilation,
        rows_in=rows_in, grid_h=grid_h, mxu_dtype=mxu_dtype)

    cost = pl.CostEstimate(
        flops=(2 * N * H_out_pad * W_out * Cp * (KH * KW)
               + 2 * N * H_out_pad * W_out * Cp * Cop),
        transcendentals=0,
        bytes_accessed=(x.size * itemsize
                        + wdw.size * jnp.dtype(wdw.dtype).itemsize
                        + wpw.size * jnp.dtype(wpw.dtype).itemsize
                        + N * H_out_pad * W_out * Cop * itemsize))

    out_nhwc = pl.pallas_call(
        kernel,
        out_shape=jax.ShapeDtypeStruct((N, H_out_pad, W_out, Cop), x_nchw.dtype),
        grid_spec=pltpu.PrefetchScalarGridSpec(
            num_scalar_prefetch=0,
            grid=(N, grid_h),
            in_specs=[
                pl.BlockSpec(memory_space=pl.ANY),                 # x stays in HBM
                pl.BlockSpec((KH, KW, Cp), lambda n, h: (0, 0, 0)),
                pl.BlockSpec((Cp, Cop), lambda n, h: (0, 0)),
            ],
            out_specs=pl.BlockSpec((1, TH, W_out, Cop),
                                   lambda n, h: (n, h, 0, 0)),
            scratch_shapes=[
                pltpu.VMEM((2, rows_in, Wp, Cp), x.dtype),
                pltpu.SemaphoreType.DMA((2,)),
            ]),
        compiler_params=pltpu.CompilerParams(
            dimension_semantics=("parallel", "arbitrary"),
            vmem_limit_bytes=32 * 1024 * 1024),
        cost_estimate=cost,
    )(x, wdw, wpw)

    # Drop padded rows / channels, NHWC -> NCHW.
    out = out_nhwc[:, :H_out, :, :C_out]
    return jnp.transpose(out, (0, 3, 1, 2))


def _reference(x_nchw, w_depthwise, w_pointwise, *, stride, padding, dilation):
    """Pure-JAX reference using lax.conv_general_dilated (matches PyTorch)."""
    C = x_nchw.shape[1]
    dw = jax.lax.conv_general_dilated(
        x_nchw, w_depthwise,
        window_strides=(stride, stride),
        padding=((padding, padding), (padding, padding)),
        rhs_dilation=(dilation, dilation),
        dimension_numbers=("NCHW", "OIHW", "NCHW"),
        feature_group_count=C)
    pw = jax.lax.conv_general_dilated(
        dw, w_pointwise,
        window_strides=(1, 1),
        padding=((0, 0), (0, 0)),
        dimension_numbers=("NCHW", "OIHW", "NCHW"))
    return pw


if __name__ == "__main__":
    # Module config (bias=False as in the PyTorch ctor default path)
    N, C_in, H, W = 2, 4, 16, 16
    C_out = 8
    kernel_size, stride, padding, dilation = 3, 1, 1, 1

    key = jax.random.PRNGKey(0)
    kx, kdw, kpw = jax.random.split(key, 3)

    x = jax.random.normal(kx, (N, C_in, H, W), dtype=jnp.float32)
    # conv1 (depthwise, groups=C_in): weight shape (C_in, 1, KH, KW)
    w_dw = jax.random.normal(kdw, (C_in, 1, kernel_size, kernel_size),
                             dtype=jnp.float32) * 0.1
    # pointwise: weight shape (C_out, C_in, 1, 1)
    w_pw = jax.random.normal(kpw, (C_out, C_in, 1, 1), dtype=jnp.float32) * 0.1

    # tile_h=8 -> grid (N=2, grid_h=2): exercises the row tiling + halo path.
    out = separable_conv2d(x, w_dw, w_pw,
                           stride=stride, padding=padding, dilation=dilation,
                           tile_h=8)
    out = jax.block_until_ready(out)

    ref = _reference(x, w_dw, w_pw,
                     stride=stride, padding=padding, dilation=dilation)
    ref = jax.block_until_ready(ref)

    assert out.shape == ref.shape, (out.shape, ref.shape)
    assert jnp.allclose(out, ref, atol=1e-4, rtol=1e-4), float(
        jnp.max(jnp.abs(out - ref)))

    print("KERNEL_OK")
</pallas_src>

<mosaic_0001>
module attributes {stable_mosaic.version = 11 : i64} {
  func.func @_sepconv_kernel(%arg0: i32, %arg1: i32, %arg2: memref<2x18x18x128xf32, #tpu.memory_space<any>>, %arg3: memref<3x3x128xf32, #tpu.memory_space<vmem>>, %arg4: memref<128x128xf32, #tpu.memory_space<vmem>>, %arg5: memref<1x8x16x128xf32, #tpu.memory_space<vmem>>, %arg6: memref<2x10x18x128xf32, #tpu.memory_space<vmem>>, %arg7: memref<2x!tpu.dma_semaphore, #tpu.memory_space<semaphore_mem>>) attributes {dimension_semantics = [#tpu.dimension_semantics<parallel>, #tpu.dimension_semantics<arbitrary>], iteration_bounds = array<i64: 2, 2>, scalar_prefetch = 0 : i64, scratch_operands = 2 : i64, tpu.core_type = #tpu.core_type<tc>, window_params = [{}, {pipeline_mode = #tpu.pipeline_mode<synchronous>, transform_indices = @transform_1, window_bounds = array<i64: 3, 3, 128>}, {pipeline_mode = #tpu.pipeline_mode<synchronous>, transform_indices = @transform_2, window_bounds = array<i64: 128, 128>}, {transform_indices = @transform_3, window_bounds = array<i64: 1, 8, 16, 128>}]} {
    %c2_i32 = arith.constant 2 : i32
    %c0_i32 = arith.constant 0 : i32
    %0 = arith.cmpi eq, %c2_i32, %c0_i32 : i32
    %c1_i32 = arith.constant 1 : i32
    %1 = arith.select %0, %c1_i32, %c2_i32 : i32
    %2 = arith.remsi %arg1, %1 : i32
    %c0_i32_0 = arith.constant 0 : i32
    %3 = arith.cmpi ne, %2, %c0_i32_0 : i32
    %c0_i32_1 = arith.constant 0 : i32
    %4 = arith.cmpi slt, %2, %c0_i32_1 : i32
    %c0_i32_2 = arith.constant 0 : i32
    %5 = arith.cmpi slt, %1, %c0_i32_2 : i32
    %6 = arith.xori %4, %5 : i1
    %7 = arith.andi %6, %3 : i1
    %8 = arith.addi %2, %1 : i32
    %9 = arith.select %7, %8, %2 : i32
    %c0_i32_3 = arith.constant 0 : i32
    %10 = arith.cmpi eq, %arg1, %c0_i32_3 : i32
    %11 = arith.extui %10 : i1 to i32
    %c0_i32_4 = arith.constant 0 : i32
    %12 = arith.cmpi ne, %11, %c0_i32_4 : i32
    scf.if %12 {
      %c0_i32_74 = arith.constant 0 : i32
      %115 = tpu.assume_multiple %c0_i32_74, 8 : i32
      %c0_i32_75 = arith.constant 0 : i32
      %c0_i32_76 = arith.constant 0 : i32
      %c0_i32_77 = arith.constant 0 : i32
      %c0_i32_78 = arith.constant 0 : i32
      %116 = tpu.memref_slice %arg2[%arg0, %115, %c0_i32_77, %c0_i32_78] : memref<2x18x18x128xf32, #tpu.memory_space<any>> -> memref<1x10x18x128xf32, #tpu.memory_space<any>>
      %117 = tpu.memref_squeeze %116 : memref<1x10x18x128xf32, #tpu.memory_space<any>> -> memref<10x18x128xf32, #tpu.memory_space<any>>
      %c0_i32_79 = arith.constant 0 : i32
      %c0_i32_80 = arith.constant 0 : i32
      %c0_i32_81 = arith.constant 0 : i32
      %118 = tpu.memref_slice %arg6[%c0_i32_75, %c0_i32_79, %c0_i32_80, %c0_i32_81] : memref<2x10x18x128xf32, #tpu.memory_space<vmem>> -> memref<1x10x18x128xf32, #tpu.memory_space<vmem>>
      %119 = tpu.memref_squeeze %118 : memref<1x10x18x128xf32, #tpu.memory_space<vmem>> -> memref<10x18x128xf32, #tpu.memory_space<vmem>>
      %120 = tpu.memref_slice %arg7[%c0_i32_76] : memref<2x!tpu.dma_semaphore, #tpu.memory_space<semaphore_mem>> -> memref<1x!tpu.dma_semaphore, #tpu.memory_space<semaphore_mem>>
      %121 = tpu.memref_squeeze %120 : memref<1x!tpu.dma_semaphore, #tpu.memory_space<semaphore_mem>> -> memref<!tpu.dma_semaphore, #tpu.memory_space<semaphore_mem>>
      tpu.enqueue_dma source(%117 : memref<10x18x128xf32, #tpu.memory_space<any>>) target(%119 : memref<10x18x128xf32, #tpu.memory_space<vmem>>) target_semaphore(%121 : memref<!tpu.dma_semaphore, #tpu.memory_space<semaphore_mem>>)
    } else {
    }
    %c8_i32 = arith.constant 8 : i32
    %13 = arith.muli %arg1, %c8_i32 : i32
    %14 = tpu.assume_multiple %13, 8 : i32
    %c0_i32_5 = arith.constant 0 : i32
    %c0_i32_6 = arith.constant 0 : i32
    %15 = tpu.memref_slice %arg2[%arg0, %14, %c0_i32_5, %c0_i32_6] : memref<2x18x18x128xf32, #tpu.memory_space<any>> -> memref<1x10x18x128xf32, #tpu.memory_space<any>>
    %16 = tpu.memref_squeeze %15 : memref<1x10x18x128xf32, #tpu.memory_space<any>> -> memref<10x18x128xf32, #tpu.memory_space<any>>
    %c0_i32_7 = arith.constant 0 : i32
    %c0_i32_8 = arith.constant 0 : i32
    %c0_i32_9 = arith.constant 0 : i32
    %17 = tpu.memref_slice %arg6[%9, %c0_i32_7, %c0_i32_8, %c0_i32_9] : memref<2x10x18x128xf32, #tpu.memory_space<vmem>> -> memref<1x10x18x128xf32, #tpu.memory_space<vmem>>
    %18 = tpu.memref_squeeze %17 : memref<1x10x18x128xf32, #tpu.memory_space<vmem>> -> memref<10x18x128xf32, #tpu.memory_space<vmem>>
    %19 = tpu.memref_slice %arg7[%9] : memref<2x!tpu.dma_semaphore, #tpu.memory_space<semaphore_mem>> -> memref<1x!tpu.dma_semaphore, #tpu.memory_space<semaphore_mem>>
    %20 = tpu.memref_squeeze %19 : memref<1x!tpu.dma_semaphore, #tpu.memory_space<semaphore_mem>> -> memref<!tpu.dma_semaphore, #tpu.memory_space<semaphore_mem>>
    tpu.wait_dma2 semaphore(%20 : memref<!tpu.dma_semaphore, #tpu.memory_space<semaphore_mem>>) src(%16 : memref<10x18x128xf32, #tpu.memory_space<any>>) dst(%18 : memref<10x18x128xf32, #tpu.memory_space<vmem>>)
    %c1_i32_10 = arith.constant 1 : i32
    %21 = arith.addi %arg1, %c1_i32_10 : i32
    %c2_i32_11 = arith.constant 2 : i32
    %22 = arith.cmpi slt, %21, %c2_i32_11 : i32
    %23 = arith.extui %22 : i1 to i32
    %c0_i32_12 = arith.constant 0 : i32
    %24 = arith.cmpi ne, %23, %c0_i32_12 : i32
    scf.if %24 {
      %c1_i32_74 = arith.constant 1 : i32
      %115 = arith.addi %arg1, %c1_i32_74 : i32
      %c1_i32_75 = arith.constant 1 : i32
      %116 = arith.subi %c1_i32_75, %9 : i32
      %c8_i32_76 = arith.constant 8 : i32
      %117 = arith.muli %115, %c8_i32_76 : i32
      %118 = tpu.assume_multiple %117, 8 : i32
      %c0_i32_77 = arith.constant 0 : i32
      %c0_i32_78 = arith.constant 0 : i32
      %119 = tpu.memref_slice %arg2[%arg0, %118, %c0_i32_77, %c0_i32_78] : memref<2x18x18x128xf32, #tpu.memory_space<any>> -> memref<1x10x18x128xf32, #tpu.memory_space<any>>
      %120 = tpu.memref_squeeze %119 : memref<1x10x18x128xf32, #tpu.memory_space<any>> -> memref<10x18x128xf32, #tpu.memory_space<any>>
      %c0_i32_79 = arith.constant 0 : i32
      %c0_i32_80 = arith.constant 0 : i32
      %c0_i32_81 = arith.constant 0 : i32
      %121 = tpu.memref_slice %arg6[%116, %c0_i32_79, %c0_i32_80, %c0_i32_81] : memref<2x10x18x128xf32, #tpu.memory_space<vmem>> -> memref<1x10x18x128xf32, #tpu.memory_space<vmem>>
      %122 = tpu.memref_squeeze %121 : memref<1x10x18x128xf32, #tpu.memory_space<vmem>> -> memref<10x18x128xf32, #tpu.memory_space<vmem>>
      %123 = tpu.memref_slice %arg7[%116] : memref<2x!tpu.dma_semaphore, #tpu.memory_space<semaphore_mem>> -> memref<1x!tpu.dma_semaphore, #tpu.memory_space<semaphore_mem>>
      %124 = tpu.memref_squeeze %123 : memref<1x!tpu.dma_semaphore, #tpu.memory_space<semaphore_mem>> -> memref<!tpu.dma_semaphore, #tpu.memory_space<semaphore_mem>>
      tpu.enqueue_dma source(%120 : memref<10x18x128xf32, #tpu.memory_space<any>>) target(%122 : memref<10x18x128xf32, #tpu.memory_space<vmem>>) target_semaphore(%124 : memref<!tpu.dma_semaphore, #tpu.memory_space<semaphore_mem>>)
    } else {
    }
    %c0 = arith.constant 0 : index
    %c0_13 = arith.constant 0 : index
    %c0_14 = arith.constant 0 : index
    %25 = vector.load %arg3[%c0, %c0_13, %c0_14] : memref<3x3x128xf32, #tpu.memory_space<vmem>>, vector<3x3x128xf32>
    %cst = arith.constant 0.000000e+00 : f32
    %26 = vector.broadcast %cst : f32 to vector<8x16x128xf32>
    %c0_i32_15 = arith.constant 0 : i32
    %c0_i32_16 = arith.constant 0 : i32
    %c0_i32_17 = arith.constant 0 : i32
    %27 = tpu.memref_slice %arg6[%9, %c0_i32_15, %c0_i32_16, %c0_i32_17] : memref<2x10x18x128xf32, #tpu.memory_space<vmem>> -> memref<1x10x18x128xf32, #tpu.memory_space<vmem>>
    %28 = tpu.memref_squeeze %27 : memref<1x10x18x128xf32, #tpu.memory_space<vmem>> -> memref<10x18x128xf32, #tpu.memory_space<vmem>>
    %c0_18 = arith.constant 0 : index
    %c0_19 = arith.constant 0 : index
    %c0_20 = arith.constant 0 : index
    %29 = vector.load %28[%c0_18, %c0_19, %c0_20] : memref<10x18x128xf32, #tpu.memory_space<vmem>>, vector<8x16x128xf32>
    %30 = vector.extract_strided_slice %25 {offsets = [0, 0, 0], sizes = [1, 1, 128], strides = [1, 1, 1]} : vector<3x3x128xf32> to vector<1x1x128xf32>
    %31 = vector.shape_cast %30 : vector<1x1x128xf32> to vector<128xf32>
    %32 = vector.shape_cast %31 : vector<128xf32> to vector<1x1x128xf32>
    %33 = vector.broadcast %32 : vector<1x1x128xf32> to vector<8x16x128xf32>
    %34 = arith.mulf %29, %33 : vector<8x16x128xf32>
    %35 = arith.addf %26, %34 : vector<8x16x128xf32>
    %c0_i32_21 = arith.constant 0 : i32
    %c0_i32_22 = arith.constant 0 : i32
    %c0_i32_23 = arith.constant 0 : i32
    %36 = tpu.memref_slice %arg6[%9, %c0_i32_21, %c0_i32_22, %c0_i32_23] : memref<2x10x18x128xf32, #tpu.memory_space<vmem>> -> memref<1x10x18x128xf32, #tpu.memory_space<vmem>>
    %37 = tpu.memref_squeeze %36 : memref<1x10x18x128xf32, #tpu.memory_space<vmem>> -> memref<10x18x128xf32, #tpu.memory_space<vmem>>
    %c0_24 = arith.constant 0 : index
    %c1 = arith.constant 1 : index
    %c0_25 = arith.constant 0 : index
    %38 = vector.load %37[%c0_24, %c1, %c0_25] : memref<10x18x128xf32, #tpu.memory_space<vmem>>, vector<8x16x128xf32>
    %39 = vector.extract_strided_slice %25 {offsets = [0, 1, 0], sizes = [1, 1, 128], strides = [1, 1, 1]} : vector<3x3x128xf32> to vector<1x1x128xf32>
    %40 = vector.shape_cast %39 : vector<1x1x128xf32> to vector<128xf32>
    %41 = vector.shape_cast %40 : vector<128xf32> to vector<1x1x128xf32>
    %42 = vector.broadcast %41 : vector<1x1x128xf32> to vector<8x16x128xf32>
    %43 = arith.mulf %38, %42 : vector<8x16x128xf32>
    %44 = arith.addf %35, %43 : vector<8x16x128xf32>
    %c0_i32_26 = arith.constant 0 : i32
    %c0_i32_27 = arith.constant 0 : i32
    %c0_i32_28 = arith.constant 0 : i32
    %45 = tpu.memref_slice %arg6[%9, %c0_i32_26, %c0_i32_27, %c0_i32_28] : memref<2x10x18x128xf32, #tpu.memory_space<vmem>> -> memref<1x10x18x128xf32, #tpu.memory_space<vmem>>
    %46 = tpu.memref_squeeze %45 : memref<1x10x18x128xf32, #tpu.memory_space<vmem>> -> memref<10x18x128xf32, #tpu.memory_space<vmem>>
    %c0_29 = arith.constant 0 : index
    %c2 = arith.constant 2 : index
    %c0_30 = arith.constant 0 : index
    %47 = vector.load %46[%c0_29, %c2, %c0_30] : memref<10x18x128xf32, #tpu.memory_space<vmem>>, vector<8x16x128xf32>
    %48 = vector.extract_strided_slice %25 {offsets = [0, 2, 0], sizes = [1, 1, 128], strides = [1, 1, 1]} : vector<3x3x128xf32> to vector<1x1x128xf32>
    %49 = vector.shape_cast %48 : vector<1x1x128xf32> to vector<128xf32>
    %50 = vector.shape_cast %49 : vector<128xf32> to vector<1x1x128xf32>
    %51 = vector.broadcast %50 : vector<1x1x128xf32> to vector<8x16x128xf32>
    %52 = arith.mulf %47, %51 : vector<8x16x128xf32>
    %53 = arith.addf %44, %52 : vector<8x16x128xf32>
    %c0_i32_31 = arith.constant 0 : i32
    %c0_i32_32 = arith.constant 0 : i32
    %c0_i32_33 = arith.constant 0 : i32
    %54 = tpu.memref_slice %arg6[%9, %c0_i32_31, %c0_i32_32, %c0_i32_33] : memref<2x10x18x128xf32, #tpu.memory_space<vmem>> -> memref<1x10x18x128xf32, #tpu.memory_space<vmem>>
    %55 = tpu.memref_squeeze %54 : memref<1x10x18x128xf32, #tpu.memory_space<vmem>> -> memref<10x18x128xf32, #tpu.memory_space<vmem>>
    %c1_34 = arith.constant 1 : index
    %c0_35 = arith.constant 0 : index
    %c0_36 = arith.constant 0 : index
    %56 = vector.load %55[%c1_34, %c0_35, %c0_36] : memref<10x18x128xf32, #tpu.memory_space<vmem>>, vector<8x16x128xf32>
    %57 = vector.extract_strided_slice %25 {offsets = [1, 0, 0], sizes = [1, 1, 128], strides = [1, 1, 1]} : vector<3x3x128xf32> to vector<1x1x128xf32>
    %58 = vector.shape_cast %57 : vector<1x1x128xf32> to vector<128xf32>
    %59 = vector.shape_cast %58 : vector<128xf32> to vector<1x1x128xf32>
    %60 = vector.broadcast %59 : vector<1x1x128xf32> to vector<8x16x128xf32>
    %61 = arith.mulf %56, %60 : vector<8x16x128xf32>
    %62 = arith.addf %53, %61 : vector<8x16x128xf32>
    %c0_i32_37 = arith.constant 0 : i32
    %c0_i32_38 = arith.constant 0 : i32
    %c0_i32_39 = arith.constant 0 : i32
    %63 = tpu.memref_slice %arg6[%9, %c0_i32_37, %c0_i32_38, %c0_i32_39] : memref<2x10x18x128xf32, #tpu.memory_space<vmem>> -> memref<1x10x18x128xf32, #tpu.memory_space<vmem>>
    %64 = tpu.memref_squeeze %63 : memref<1x10x18x128xf32, #tpu.memory_space<vmem>> -> memref<10x18x128xf32, #tpu.memory_space<vmem>>
    %c1_40 = arith.constant 1 : index
    %c1_41 = arith.constant 1 : index
    %c0_42 = arith.constant 0 : index
    %65 = vector.load %64[%c1_40, %c1_41, %c0_42] : memref<10x18x128xf32, #tpu.memory_space<vmem>>, vector<8x16x128xf32>
    %66 = vector.extract_strided_slice %25 {offsets = [1, 1, 0], sizes = [1, 1, 128], strides = [1, 1, 1]} : vector<3x3x128xf32> to vector<1x1x128xf32>
    %67 = vector.shape_cast %66 : vector<1x1x128xf32> to vector<128xf32>
    %68 = vector.shape_cast %67 : vector<128xf32> to vector<1x1x128xf32>
    %69 = vector.broadcast %68 : vector<1x1x128xf32> to vector<8x16x128xf32>
    %70 = arith.mulf %65, %69 : vector<8x16x128xf32>
    %71 = arith.addf %62, %70 : vector<8x16x128xf32>
    %c0_i32_43 = arith.constant 0 : i32
    %c0_i32_44 = arith.constant 0 : i32
    %c0_i32_45 = arith.constant 0 : i32
    %72 = tpu.memref_slice %arg6[%9, %c0_i32_43, %c0_i32_44, %c0_i32_45] : memref<2x10x18x128xf32, #tpu.memory_space<vmem>> -> memref<1x10x18x128xf32, #tpu.memory_space<vmem>>
    %73 = tpu.memref_squeeze %72 : memref<1x10x18x128xf32, #tpu.memory_space<vmem>> -> memref<10x18x128xf32, #tpu.memory_space<vmem>>
    %c1_46 = arith.constant 1 : index
    %c2_47 = arith.constant 2 : index
    %c0_48 = arith.constant 0 : index
    %74 = vector.load %73[%c1_46, %c2_47, %c0_48] : memref<10x18x128xf32, #tpu.memory_space<vmem>>, vector<8x16x128xf32>
    %75 = vector.extract_strided_slice %25 {offsets = [1, 2, 0], sizes = [1, 1, 128], strides = [1, 1, 1]} : vector<3x3x128xf32> to vector<1x1x128xf32>
    %76 = vector.shape_cast %75 : vector<1x1x128xf32> to vector<128xf32>
    %77 = vector.shape_cast %76 : vector<128xf32> to vector<1x1x128xf32>
    %78 = vector.broadcast %77 : vector<1x1x128xf32> to vector<8x16x128xf32>
    %79 = arith.mulf %74, %78 : vector<8x16x128xf32>
    %80 = arith.addf %71, %79 : vector<8x16x128xf32>
    %c0_i32_49 = arith.constant 0 : i32
    %c0_i32_50 = arith.constant 0 : i32
    %c0_i32_51 = arith.constant 0 : i32
    %81 = tpu.memref_slice %arg6[%9, %c0_i32_49, %c0_i32_50, %c0_i32_51] : memref<2x10x18x128xf32, #tpu.memory_space<vmem>> -> memref<1x10x18x128xf32, #tpu.memory_space<vmem>>
    %82 = tpu.memref_squeeze %81 : memref<1x10x18x128xf32, #tpu.memory_space<vmem>> -> memref<10x18x128xf32, #tpu.memory_space<vmem>>
    %c2_52 = arith.constant 2 : index
    %c0_53 = arith.constant 0 : index
    %c0_54 = arith.constant 0 : index
    %83 = vector.load %82[%c2_52, %c0_53, %c0_54] : memref<10x18x128xf32, #tpu.memory_space<vmem>>, vector<8x16x128xf32>
    %84 = vector.extract_strided_slice %25 {offsets = [2, 0, 0], sizes = [1, 1, 128], strides = [1, 1, 1]} : vector<3x3x128xf32> to vector<1x1x128xf32>
    %85 = vector.shape_cast %84 : vector<1x1x128xf32> to vector<128xf32>
    %86 = vector.shape_cast %85 : vector<128xf32> to vector<1x1x128xf32>
    %87 = vector.broadcast %86 : vector<1x1x128xf32> to vector<8x16x128xf32>
    %88 = arith.mulf %83, %87 : vector<8x16x128xf32>
    %89 = arith.addf %80, %88 : vector<8x16x128xf32>
    %c0_i32_55 = arith.constant 0 : i32
    %c0_i32_56 = arith.constant 0 : i32
    %c0_i32_57 = arith.constant 0 : i32
    %90 = tpu.memref_slice %arg6[%9, %c0_i32_55, %c0_i32_56, %c0_i32_57] : memref<2x10x18x128xf32, #tpu.memory_space<vmem>> -> memref<1x10x18x128xf32, #tpu.memory_space<vmem>>
    %91 = tpu.memref_squeeze %90 : memref<1x10x18x128xf32, #tpu.memory_space<vmem>> -> memref<10x18x128xf32, #tpu.memory_space<vmem>>
    %c2_58 = arith.constant 2 : index
    %c1_59 = arith.constant 1 : index
    %c0_60 = arith.constant 0 : index
    %92 = vector.load %91[%c2_58, %c1_59, %c0_60] : memref<10x18x128xf32, #tpu.memory_space<vmem>>, vector<8x16x128xf32>
    %93 = vector.extract_strided_slice %25 {offsets = [2, 1, 0], sizes = [1, 1, 128], strides = [1, 1, 1]} : vector<3x3x128xf32> to vector<1x1x128xf32>
    %94 = vector.shape_cast %93 : vector<1x1x128xf32> to vector<128xf32>
    %95 = vector.shape_cast %94 : vector<128xf32> to vector<1x1x128xf32>
    %96 = vector.broadcast %95 : vector<1x1x128xf32> to vector<8x16x128xf32>
    %97 = arith.mulf %92, %96 : vector<8x16x128xf32>
    %98 = arith.addf %89, %97 : vector<8x16x128xf32>
    %c0_i32_61 = arith.constant 0 : i32
    %c0_i32_62 = arith.constant 0 : i32
    %c0_i32_63 = arith.constant 0 : i32
    %99 = tpu.memref_slice %arg6[%9, %c0_i32_61, %c0_i32_62, %c0_i32_63] : memref<2x10x18x128xf32, #tpu.memory_space<vmem>> -> memref<1x10x18x128xf32, #tpu.memory_space<vmem>>
    %100 = tpu.memref_squeeze %99 : memref<1x10x18x128xf32, #tpu.memory_space<vmem>> -> memref<10x18x128xf32, #tpu.memory_space<vmem>>
    %c2_64 = arith.constant 2 : index
    %c2_65 = arith.constant 2 : index
    %c0_66 = arith.constant 0 : index
    %101 = vector.load %100[%c2_64, %c2_65, %c0_66] : memref<10x18x128xf32, #tpu.memory_space<vmem>>, vector<8x16x128xf32>
    %102 = vector.extract_strided_slice %25 {offsets = [2, 2, 0], sizes = [1, 1, 128], strides = [1, 1, 1]} : vector<3x3x128xf32> to vector<1x1x128xf32>
    %103 = vector.shape_cast %102 : vector<1x1x128xf32> to vector<128xf32>
    %104 = vector.shape_cast %103 : vector<128xf32> to vector<1x1x128xf32>
    %105 = vector.broadcast %104 : vector<1x1x128xf32> to vector<8x16x128xf32>
    %106 = arith.mulf %101, %105 : vector<8x16x128xf32>
    %107 = arith.addf %98, %106 : vector<8x16x128xf32>
    %108 = vector.shape_cast %107 : vector<8x16x128xf32> to vector<128x128xf32>
    %c0_67 = arith.constant 0 : index
    %c0_68 = arith.constant 0 : index
    %109 = vector.load %arg4[%c0_67, %c0_68] : memref<128x128xf32, #tpu.memory_space<vmem>>, vector<128x128xf32>
    %cst_69 = arith.constant dense<0.000000e+00> : vector<128x128xf32>
    %110 = tpu.matmul %108, %109, %cst_69 {dimension_numbers = #tpu.dot_dimension_numbers<[1], [0], [0], [1], [0, 0, 1, 1], [], []>} : vector<128x128xf32>, vector<128x128xf32>, vector<128x128xf32> -> vector<128x128xf32>
    %111 = vector.shape_cast %110 : vector<128x128xf32> to vector<8x16x128xf32>
    %c0_70 = arith.constant 0 : index
    %c0_71 = arith.constant 0 : index
    %c0_72 = arith.constant 0 : index
    %c0_73 = arith.constant 0 : index
    %112 = vector.load %arg5[%c0_70, %c0_71, %c0_72, %c0_73] : memref<1x8x16x128xf32, #tpu.memory_space<vmem>>, vector<1x8x16x128xf32>
    %113 = vector.shape_cast %112 : vector<1x8x16x128xf32> to vector<8x16x128xf32>
    %114 = vector.shape_cast %111 : vector<8x16x128xf32> to vector<1x8x16x128xf32>
    tpu.vector_store %arg5[%c0_70, %c0_71, %c0_72, %c0_73], %114 {strides = array<i32>} : memref<1x8x16x128xf32, #tpu.memory_space<vmem>>, vector<1x8x16x128xf32>,
    return
  }
  func.func @transform_1(%arg0: i32, %arg1: i32) -> (i32, i32, i32) {
    %c0_i32 = arith.constant 0 : i32
    %c0_i32_0 = arith.constant 0 : i32
    %c0_i32_1 = arith.constant 0 : i32
    %c0_i32_2 = arith.constant 0 : i32
    return %c0_i32, %c0_i32_0, %c0_i32_1 : i32, i32, i32
  }
  func.func @transform_2(%arg0: i32, %arg1: i32) -> (i32, i32) {
    %c0_i32 = arith.constant 0 : i32
    %c0_i32_0 = arith.constant 0 : i32
    %c0_i32_1 = arith.constant 0 : i32
    return %c0_i32, %c0_i32_0 : i32, i32
  }
  func.func @transform_3(%arg0: i32, %arg1: i32) -> (i32, i32, i32, i32) {
    %c0_i32 = arith.constant 0 : i32
    %c0_i32_0 = arith.constant 0 : i32
    %c0_i32_1 = arith.constant 0 : i32
    return %arg0, %arg1, %c0_i32, %c0_i32_0 : i32, i32, i32, i32
  }
}

</mosaic_0001>

<llo_original>
// kernel: tpu_custom_call.1
$region0: #{tpu_custom_call.1}
  #allocation0 [shape = 'u32[]', space=smem, size = 0x4, offset = 0x4, fixed_abs, tag = 'smem constant byte address 0x4 - core index']
  #allocation1 [shape = 'u32[72,128]{1,0:T(1,128)}', space=vmem, size = 0x9000, scoped, tag = 'internal scratch']
  #allocation2 [shape = 'f32[2,10,18,128]{3,2,1,0:T(8,128)}', space=vmem, size = 0x3c000, scoped, tag = 'scratch operand']
  #allocation3 [shape = 's32[2]{0}', space=sflag, size = 0x8, scoped, tag = 'scratch operand']
  #allocation6 [shape = 's32[]', space=sflag, size = 0x4, offset = 0, fixed_abs, tag = 'sflag constant byte address 0x0 - dummy sync flag']
  #allocation7 [shape = 's32[]', space=sflag, size = 0x4, offset = 0, fixed_abs, tag = 'sflag constant byte address 0x0 - dummy sync flag']
  %s0 = inlined_call_operand.vmem [shape: f32[2,18,18,128], index: 0, kind: input, shape index: {}]
  %s1 = inlined_call_operand.vmem [shape: f32[3,3,128], index: 1, kind: input, shape index: {}]
  %s2 = inlined_call_operand.vmem [shape: f32[128,128], index: 2, kind: input, shape index: {}]
  %s3 = inlined_call_operand.hbm [shape: f32[2,16,16,128], index: 3, kind: output, shape index: {}]
  %s4 = sld [smem:[#allocation0]]
  $region93: #{tpu_custom_call.1} parent=0
    _
  %s6 = ssub.s32 1, %s4
  %s7 = scalar_select 0, %s6, %s4
  $region1: #{tpu_custom_call.1} parent=0
    #allocation4 [shape = 'u8[131072]{0}', space=vmem, size = 0x20000, scoped, tag = 'output window, operand 0']
    #allocation5 [shape = 's32[2]{0}', space=sflag, size = 0x8, scoped, tag = 'scoped memory for tpu_custom_call.1']
    %8 = vsyncpa [#allocation5], 0
    %s9 = scalar_lea.sflag [#allocation5], 1
    %10 = vsyncpa %s9, 0
    loop: start=0, step=1, limit=6
    $region2: #{tpu_custom_call.1} parent=1 // loop_pre_header
      _
    $region3: #{tpu_custom_call.1} parent=1 // loop_header
      %s12 = sphi 0, %s16
      %p13 = scmp.ge.s32.totalorder %s12, 6
      %s19 = sphi 0, %s31
      %s20 = sphi 0, %s27
      %s21 = sphi 0, %s19
      %s22 = sphi 0, %s20
      %s23 = sphi 0, %s21
      %s24 = sphi 0, %s22
      %s32 = sphi 0, %s32
      %s34 = sphi 0, %s32
      %s35 = sphi 0, %s34
      %s49 = sphi 0, %s35
      %s53 = sphi 0, %s53
      %s55 = sphi 0, %s53
      %s56 = sphi 0, %s55
      %s70 = sphi 0, %s56
      %s78 = sphi 0, %s80
      %s81 = sphi 0, %s78
      %s82 = sphi 0, %s81
      %s98 = sphi 0, %s82
    $region4: #{tpu_custom_call.1} parent=1 // loop_header_branch
      %15 = sbr.rel (%p13) target = $region8
    $region5: #{tpu_custom_call.1} parent=1 // loop_body
      %s17 = ssub.s32 %s12, 1
      %s18 = ssub.s32 %s12, 2
      %s25 = sadd.s32 1, %s20
      %p26 = scmp.ge.s32.totalorder %s25, 2
      %s27 = scalar_select %p26, 0, %s25
      %s28 = sadd.s32 1, %s19
      %s29 = scalar_select %p26, %s28, %s19
      %p30 = scmp.ge.s32.totalorder %s29, 2
      %s31 = scalar_select %p30, 0, %s29
      %s33 = sadd.s32 %s32, 1
      %p36 = scmp.eq.s32.totalorder %s12, 3
      %p37 = scmp.ne.s32.totalorder %s32, %s34
      %p38 = scmp.eq.s32.totalorder %s12, 0
      %p39 = por %p37, %p38
      %p40 = scmp.ne.s32.totalorder %s32, %s34
      %p41 = scmp.eq.s32.totalorder %s17, 3
      %p42 = por %p40, %p41
      %p43 = scmp.ne.s32.totalorder %s34, %s35
      %p44 = scmp.eq.s32.totalorder %s17, 0
      %p45 = por %p43, %p44
      %p46 = scmp.ne.s32.totalorder %s34, %s35
      %p47 = scmp.eq.s32.totalorder %s18, 3
      %p48 = por %p46, %p47
      %p50 = scmp.ne.s32.totalorder %s35, %s49
      %p51 = scmp.eq.s32.totalorder %s18, 0
      %p52 = por %p50, %p51
      %s54 = sadd.s32 %s53, 1
      %p57 = scmp.eq.s32.totalorder %s12, 3
      %p58 = scmp.ne.s32.totalorder %s53, %s55
      %p59 = scmp.eq.s32.totalorder %s12, 0
      %p60 = por %p58, %p59
      %p61 = scmp.ne.s32.totalorder %s53, %s55
      %p62 = scmp.eq.s32.totalorder %s17, 3
      %p63 = por %p61, %p62
      %p64 = scmp.ne.s32.totalorder %s55, %s56
      %p65 = scmp.eq.s32.totalorder %s17, 0
      %p66 = por %p64, %p65
      %p67 = scmp.ne.s32.totalorder %s55, %s56
      %p68 = scmp.eq.s32.totalorder %s18, 3
      %p69 = por %p67, %p68
      %p71 = scmp.ne.s32.totalorder %s56, %s70
      %p72 = scmp.eq.s32.totalorder %s18, 0
      %p73 = por %p71, %p72
      %s74 = ssub.s32 %s19, %s31
      %s75 = ssub.s32 %s20, %s27
      %s76 = sor.u32 %s74, %s75
      %p77 = scmp.eq.s32.totalorder %s76, 0
      %s79 = sadd.s32 %s78, 1
      %s80 = scalar_select %p77, %s78, %s79
      %p83 = pneg %p77
      %p84 = scmp.eq.s32.totalorder %s12, 3
      %p85 = por %p83, %p84
      %p86 = scmp.ne.s32.totalorder %s78, %s81
      %p87 = scmp.eq.s32.totalorder %s12, 0
      %p88 = por %p86, %p87
      %p89 = scmp.ne.s32.totalorder %s78, %s81
      %p90 = scmp.eq.s32.totalorder %s17, 3
      %p91 = por %p89, %p90
      %p92 = scmp.ne.s32.totalorder %s81, %s82
      %p93 = scmp.eq.s32.totalorder %s17, 0
      %p94 = por %p92, %p93
      %p95 = scmp.ne.s32.totalorder %s81, %s82
      %p96 = scmp.eq.s32.totalorder %s18, 3
      %p97 = por %p95, %p96
      %p99 = scmp.ne.s32.totalorder %s82, %s98
      %p100 = scmp.eq.s32.totalorder %s18, 0
      %p101 = por %p99, %p100
      %p102 = scmp.le.s32.totalorder 1, %s12
      %p103 = scmp.lt.s32.totalorder %s12, 5
      %p104 = pnand %p102, %p103
      %p105 = pneg %p104
      // Predicated region
      $region9: #{tpu_custom_call.1} parent=5 // pred_check
        _
      $region10: #{tpu_custom_call.1} parent=5 // pred_check_branch
        %107 = sbr.rel (%p104) target = $region12
      $region11: #{tpu_custom_call.1} parent=5 // pred_region
        %s108 = ssub.s32 %s12, 1
        // Predicated region
        $region13: #{tpu_custom_call.1} parent=11 // pred_check
          %p109 = pneg %p45
        $region14: #{tpu_custom_call.1} parent=11 // pred_check_branch
          %111 = sbr.rel (%p109) target = $region16
        $region15: #{tpu_custom_call.1} parent=11 // pred_region
          _
        $region16: #{tpu_custom_call.1} parent=11 // pred_fallthru
          _
        // Predicated region
        $region17: #{tpu_custom_call.1} parent=11 // pred_check
          %p112 = pneg %p66
        $region18: #{tpu_custom_call.1} parent=11 // pred_check_branch
          %114 = sbr.rel (%p112) target = $region20
        $region19: #{tpu_custom_call.1} parent=11 // pred_region
          _
        $region20: #{tpu_custom_call.1} parent=11 // pred_fallthru
          _
      $region12: #{tpu_custom_call.1} parent=5 // pred_fallthru
        _
      %p115 = scmp.lt.s32.totalorder %s12, 4
      // Predicated region
      $region21: #{tpu_custom_call.1} parent=5 // pred_check
        %p116 = pneg %p115
      $region22: #{tpu_custom_call.1} parent=5 // pred_check_branch
        %118 = sbr.rel (%p116) target = $region24
      $region23: #{tpu_custom_call.1} parent=5 // pred_region
        _
      $region24: #{tpu_custom_call.1} parent=5 // pred_fallthru
        _
      %p119 = scmp.le.s32.totalorder 1, %s12
      %p120 = scmp.lt.s32.totalorder %s12, 5
      %p121 = pnand %p119, %p120
      %p122 = pneg %p121
      // Predicated region
      $region25: #{tpu_custom_call.1} parent=5 // pred_check
        _
      $region26: #{tpu_custom_call.1} parent=5 // pred_check_branch
        %124 = sbr.rel (%p121) target = $region28
      $region27: #{tpu_custom_call.1} parent=5 // pred_region
        %s125 = ssub.s32 %s12, 1
        %p126 = pneg %p45
        %p127 = pneg %p42
        %p128 = pneg %p66
        %p129 = pneg %p63
        %p130 = pneg %p94
        %p131 = pneg %p91
        %s132 = sand.u32 %s81, 1
        %s133 = scalar_lea.sflag [#allocation5], %s132
        %s134 = sand.u32 %s81, 1
        %s135 = smul.addr %s134, 128
        %s136 = scalar_lea.vmem [#allocation4], %s135
        %s137 = smul.u32 8, %s22
        %p138 = scmp.lt.s32.totalorder %s22, 0
        %s139 = ssub.s32 0, %s22
        %s140 = scalar_select %p138, %s139, %s22
        %s141 = sand.u32 %s140, 1
        %s142 = ssub.s32 0, %s141
        %s143 = scalar_select %p138, %s142, %s141
        %p144 = scmp.ne.s32.totalorder %s143, 0
        %p145 = scmp.lt.s32.totalorder %s143, 0
        %p146 = pnand %p145, %p144
        %p147 = pneg %p146
        %s148 = sadd.s32 %s143, 2
        %s149 = scalar_select %p147, %s148, %s143
        %p150 = scmp.eq.s32.totalorder %s22, 0
        // Predicated region
        $region29: #{tpu_custom_call.1} parent=27 // pred_check
          %p151 = pneg %p150
        $region30: #{tpu_custom_call.1} parent=27 // pred_check_branch
          %153 = sbr.rel (%p151) target = $region32
        $region31: #{tpu_custom_call.1} parent=27 // pred_region
          %s154 = smul.u32 0, 24
          %s155 = smul.u32 %s21, 432
          %s156 = sadd.s32 %s154, %s155
          %s157 = scalar_lea.vmem %s0, %s156
          // Predicated region
          $region33: #{tpu_custom_call.1} parent=31 // pred_check
            _
          $region34: #{tpu_custom_call.1} parent=31 // pred_check_branch
            %159 = sbr.rel (0) target = $region36
          $region35: #{tpu_custom_call.1} parent=31 // pred_region
            %s160 = scalar_lea.vmem %s157, 16
            %s161 = scalar_lea.vmem [#allocation2], 16
            loop: start=0, step=1, limit=1
            $region37: #{tpu_custom_call.1} parent=35 // loop_pre_header
              _
            $region38: #{tpu_custom_call.1} parent=35 // loop_header
              %s163 = sphi 0, %s167
              %p164 = scmp.ge.s32.totalorder %s163, 1
              %s168 = sphi %s157, %s157
              %s169 = sphi [#allocation2], [#allocation2]
            $region39: #{tpu_custom_call.1} parent=35 // loop_header_branch
              %166 = sbr.rel (%p164) target = $region43
            $region40: #{tpu_custom_call.1} parent=35 // loop_body
              %v170 = vld [vmem:[%s168] sm:$0xff]
              %171 = vst [vmem:[%s169] sm:$0xff] %v170
              %v172 = vld [vmem:[%s168 + $0x8] sm:$0xff]
              %173 = vst [vmem:[%s169 + $0x8] sm:$0xff] %v172
              %v174 = vld [vmem:[%s168 + $0x18] sm:$0xff]
              %175 = vst [vmem:[%s169 + $0x18] sm:$0xff] %v174
              %v176 = vld [vmem:[%s168 + $0x20] sm:$0xff]
              %177 = vst [vmem:[%s169 + $0x20] sm:$0xff] %v176
              %v178 = vld [vmem:[%s168 + $0x30] sm:$0xff]
              %179 = vst [vmem:[%s169 + $0x30] sm:$0xff] %v178
              %v180 = vld [vmem:[%s168 + $0x38] sm:$0xff]
              %181 = vst [vmem:[%s169 + $0x38] sm:$0xff] %v180
              %v182 = vld [vmem:[%s168 + $0x48] sm:$0xff]
              %183 = vst [vmem:[%s169 + $0x48] sm:$0xff] %v182
              %v184 = vld [vmem:[%s168 + $0x50] sm:$0xff]
              %185 = vst [vmem:[%s169 + $0x50] sm:$0xff] %v184
              %v186 = vld [vmem:[%s168 + $0x60] sm:$0xff]
              %187 = vst [vmem:[%s169 + $0x60] sm:$0xff] %v186
              %v188 = vld [vmem:[%s168 + $0x68] sm:$0xff]
              %189 = vst [vmem:[%s169 + $0x68] sm:$0xff] %v188
              %v190 = vld [vmem:[%s168 + $0x78] sm:$0xff]
              %191 = vst [vmem:[%s169 + $0x78] sm:$0xff] %v190
              %v192 = vld [vmem:[%s168 + $0x80] sm:$0xff]
              %193 = vst [vmem:[%s169 + $0x80] sm:$0xff] %v192
              %v194 = vld [vmem:[%s168 + $0x90] sm:$0xff]
              %195 = vst [vmem:[%s169 + $0x90] sm:$0xff] %v194
              %v196 = vld [vmem:[%s168 + $0x98] sm:$0xff]
              %197 = vst [vmem:[%s169 + $0x98] sm:$0xff] %v196
              %v198 = vld [vmem:[%s168 + $0xa8] sm:$0xff]
              %199 = vst [vmem:[%s169 + $0xa8] sm:$0xff] %v198
              %v200 = vld [vmem:[%s168 + $0xb0] sm:$0xff]
              %201 = vst [vmem:[%s169 + $0xb0] sm:$0xff] %v200
              %v202 = vld [vmem:[%s168 + $0xc0] sm:$0xff]
              %203 = vst [vmem:[%s169 + $0xc0] sm:$0xff] %v202
              %v204 = vld [vmem:[%s168 + $0xc8] sm:$0xff]
              %205 = vst [vmem:[%s169 + $0xc8] sm:$0xff] %v204
              %v206 = vld [vmem:[%s168 + $0xd8] sm:$0xff]
              %207 = vst [vmem:[%s169 + $0xd8] sm:$0xff] %v206
              %v208 = vld [vmem:[%s168 + $0xe0] sm:$0xff]
              %209 = vst [vmem:[%s169 + $0xe0] sm:$0xff] %v208
            $region41: #{tpu_custom_call.1} parent=35 // loop_footer
              %s167 = sadd.s32 1, %s163
            $region42: #{tpu_custom_call.1} parent=35 // loop_footer_branch
              %162 = sbr.rel target = $region38
            $region43: #{tpu_custom_call.1} parent=35 // loop_exit
              _
            %s211 = ssub.s32 4, 1
            loop: start=0, step=1, limit=1
            $region44: #{tpu_custom_call.1} parent=35 // loop_pre_header
              _
            $region45: #{tpu_custom_call.1} parent=35 // loop_header
              %s213 = sphi 0, %s217
              %p214 = scmp.ge.s32.totalorder %s213, 1
              %s218 = sphi %s160, %s160
              %s219 = sphi %s161, %s161
            $region46: #{tpu_custom_call.1} parent=35 // loop_header_branch
              %216 = sbr.rel (%p214) target = $region50
            $region47: #{tpu_custom_call.1} parent=35 // loop_body
              %v220 = vld [vmem:[%s218] sm:%s211]
              %221 = vst [vmem:[%s219] sm:%s211] %v220
              %v222 = vld [vmem:[%s218 + $0x18] sm:%s211]
              %223 = vst [vmem:[%s219 + $0x18] sm:%s211] %v222
              %v224 = vld [vmem:[%s218 + $0x30] sm:%s211]
              %225 = vst [vmem:[%s219 + $0x30] sm:%s211] %v224
              %v226 = vld [vmem:[%s218 + $0x48] sm:%s211]
              %227 = vst [vmem:[%s219 + $0x48] sm:%s211] %v226
              %v228 = vld [vmem:[%s218 + $0x60] sm:%s211]
              %229 = vst [vmem:[%s219 + $0x60] sm:%s211] %v228
              %v230 = vld [vmem:[%s218 + $0x78] sm:%s211]
              %231 = vst [vmem:[%s219 + $0x78] sm:%s211] %v230
              %v232 = vld [vmem:[%s218 + $0x90] sm:%s211]
              %233 = vst [vmem:[%s219 + $0x90] sm:%s211] %v232
              %v234 = vld [vmem:[%s218 + $0xa8] sm:%s211]
              %235 = vst [vmem:[%s219 + $0xa8] sm:%s211] %v234
              %v236 = vld [vmem:[%s218 + $0xc0] sm:%s211]
              %237 = vst [vmem:[%s219 + $0xc0] sm:%s211] %v236
              %v238 = vld [vmem:[%s218 + $0xd8] sm:%s211]
              %239 = vst [vmem:[%s219 + $0xd8] sm:%s211] %v238
            $region48: #{tpu_custom_call.1} parent=35 // loop_footer
              %s217 = sadd.s32 1, %s213
            $region49: #{tpu_custom_call.1} parent=35 // loop_footer_branch
              %212 = sbr.rel target = $region45
            $region50: #{tpu_custom_call.1} parent=35 // loop_exit
              _
          $region36: #{tpu_custom_call.1} parent=31 // pred_fallthru
            _
          // Predicated region
          $region51: #{tpu_custom_call.1} parent=31 // pred_check
            _
          $region52: #{tpu_custom_call.1} parent=31 // pred_check_branch
            %242 = sbr.rel (0) target = $region54
          $region53: #{tpu_custom_call.1} parent=31 // pred_region
            %243 = vsyncadd [#allocation3], 2880
          $region54: #{tpu_custom_call.1} parent=31 // pred_fallthru
            _
        $region32: #{tpu_custom_call.1} parent=27 // pred_fallthru
          _
        %s244 = smul.u32 %s22, 8
        %s245 = smul.u32 %s149, 240
        %s246 = scalar_lea.vmem [#allocation2], %s245
        %s247 = scalar_lea.sflag [#allocation3], %s149
        %s248 = smul.u32 10, 18
        %s249 = smul.u32 %s248, 1
        %s250 = sshll.u32 %s249, 4
        %251 = dma.done %s247, %s250
        %s252 = sadd.s32 %s22, 1
        %p253 = scmp.lt.s32.totalorder %s252, 2
        // Predicated region
        $region55: #{tpu_custom_call.1} parent=27 // pred_check
          %p254 = pneg %p253
        $region56: #{tpu_custom_call.1} parent=27 // pred_check_branch
          %256 = sbr.rel (%p254) target = $region58
        $region57: #{tpu_custom_call.1} parent=27 // pred_region
          %s257 = ssub.s32 1, %s149
          %s258 = smul.u32 %s252, 8
          %s259 = smul.u32 %s258, 24
          %s260 = smul.u32 %s21, 432
          %s261 = sadd.s32 %s259, %s260
          %s262 = scalar_lea.vmem %s0, %s261
          %s263 = smul.u32 %s257, 240
          %s264 = scalar_lea.vmem [#allocation2], %s263
          %s265 = scalar_lea.sflag [#allocation3], %s257
          // Predicated region
          $region59: #{tpu_custom_call.1} parent=57 // pred_check
            _
          $region60: #{tpu_custom_call.1} parent=57 // pred_check_branch
            %267 = sbr.rel (0) target = $region62
          $region61: #{tpu_custom_call.1} parent=57 // pred_region
            %s268 = scalar_lea.vmem %s262, 16
            %s269 = scalar_lea.vmem %s264, 16 [#allocation2]
            loop: start=0, step=1, limit=1
            $region63: #{tpu_custom_call.1} parent=61 // loop_pre_header
              _
            $region64: #{tpu_custom_call.1} parent=61 // loop_header
              %s271 = sphi 0, %s275
              %p272 = scmp.ge.s32.totalorder %s271, 1
              %s276 = sphi %s262, %s262
              %s277 = sphi %s264, %s264
            $region65: #{tpu_custom_call.1} parent=61 // loop_header_branch
              %274 = sbr.rel (%p272) target = $region69
            $region66: #{tpu_custom_call.1} parent=61 // loop_body
              %v278 = vld [vmem:[%s276] sm:$0xff]
              %279 = vst [vmem:[%s277] sm:$0xff] %v278
              %v280 = vld [vmem:[%s276 + $0x8] sm:$0xff]
              %281 = vst [vmem:[%s277 + $0x8] sm:$0xff] %v280
              %v282 = vld [vmem:[%s276 + $0x18] sm:$0xff]
              %283 = vst [vmem:[%s277 + $0x18] sm:$0xff] %v282
              %v284 = vld [vmem:[%s276 + $0x20] sm:$0xff]
              %285 = vst [vmem:[%s277 + $0x20] sm:$0xff] %v284
              %v286 = vld [vmem:[%s276 + $0x30] sm:$0xff]
              %287 = vst [vmem:[%s277 + $0x30] sm:$0xff] %v286
              %v288 = vld [vmem:[%s276 + $0x38] sm:$0xff]
              %289 = vst [vmem:[%s277 + $0x38] sm:$0xff] %v288
              %v290 = vld [vmem:[%s276 + $0x48] sm:$0xff]
              %291 = vst [vmem:[%s277 + $0x48] sm:$0xff] %v290
              %v292 = vld [vmem:[%s276 + $0x50] sm:$0xff]
              %293 = vst [vmem:[%s277 + $0x50] sm:$0xff] %v292
              %v294 = vld [vmem:[%s276 + $0x60] sm:$0xff]
              %295 = vst [vmem:[%s277 + $0x60] sm:$0xff] %v294
              %v296 = vld [vmem:[%s276 + $0x68] sm:$0xff]
              %297 = vst [vmem:[%s277 + $0x68] sm:$0xff] %v296
              %v298 = vld [vmem:[%s276 + $0x78] sm:$0xff]
              %299 = vst [vmem:[%s277 + $0x78] sm:$0xff] %v298
              %v300 = vld [vmem:[%s276 + $0x80] sm:$0xff]
              %301 = vst [vmem:[%s277 + $0x80] sm:$0xff] %v300
              %v302 = vld [vmem:[%s276 + $0x90] sm:$0xff]
              %303 = vst [vmem:[%s277 + $0x90] sm:$0xff] %v302
              %v304 = vld [vmem:[%s276 + $0x98] sm:$0xff]
              %305 = vst [vmem:[%s277 + $0x98] sm:$0xff] %v304
              %v306 = vld [vmem:[%s276 + $0xa8] sm:$0xff]
              %307 = vst [vmem:[%s277 + $0xa8] sm:$0xff] %v306
              %v308 = vld [vmem:[%s276 + $0xb0] sm:$0xff]
              %309 = vst [vmem:[%s277 + $0xb0] sm:$0xff] %v308
              %v310 = vld [vmem:[%s276 + $0xc0] sm:$0xff]
              %311 = vst [vmem:[%s277 + $0xc0] sm:$0xff] %v310
              %v312 = vld [vmem:[%s276 + $0xc8] sm:$0xff]
              %313 = vst [vmem:[%s277 + $0xc8] sm:$0xff] %v312
              %v314 = vld [vmem:[%s276 + $0xd8] sm:$0xff]
              %315 = vst [vmem:[%s277 + $0xd8] sm:$0xff] %v314
              %v316 = vld [vmem:[%s276 + $0xe0] sm:$0xff]
              %317 = vst [vmem:[%s277 + $0xe0] sm:$0xff] %v316
            $region67: #{tpu_custom_call.1} parent=61 // loop_footer
              %s275 = sadd.s32 1, %s271
            $region68: #{tpu_custom_call.1} parent=61 // loop_footer_branch
              %270 = sbr.rel target = $region64
            $region69: #{tpu_custom_call.1} parent=61 // loop_exit
              _
            %s319 = ssub.s32 4, 1
            loop: start=0, step=1, limit=1
            $region70: #{tpu_custom_call.1} parent=61 // loop_pre_header
              _
            $region71: #{tpu_custom_call.1} parent=61 // loop_header
              %s321 = sphi 0, %s325
              %p322 = scmp.ge.s32.totalorder %s321, 1
              %s326 = sphi %s268, %s268
              %s327 = sphi %s269, %s269
            $region72: #{tpu_custom_call.1} parent=61 // loop_header_branch
              %324 = sbr.rel (%p322) target = $region76
            $region73: #{tpu_custom_call.1} parent=61 // loop_body
              %v328 = vld [vmem:[%s326] sm:%s319]
              %329 = vst [vmem:[%s327] sm:%s319] %v328
              %v330 = vld [vmem:[%s326 + $0x18] sm:%s319]
              %331 = vst [vmem:[%s327 + $0x18] sm:%s319] %v330
              %v332 = vld [vmem:[%s326 + $0x30] sm:%s319]
              %333 = vst [vmem:[%s327 + $0x30] sm:%s319] %v332
              %v334 = vld [vmem:[%s326 + $0x48] sm:%s319]
              %335 = vst [vmem:[%s327 + $0x48] sm:%s319] %v334
              %v336 = vld [vmem:[%s326 + $0x60] sm:%s319]
              %337 = vst [vmem:[%s327 + $0x60] sm:%s319] %v336
              %v338 = vld [vmem:[%s326 + $0x78] sm:%s319]
              %339 = vst [vmem:[%s327 + $0x78] sm:%s319] %v338
              %v340 = vld [vmem:[%s326 + $0x90] sm:%s319]
              %341 = vst [vmem:[%s327 + $0x90] sm:%s319] %v340
              %v342 = vld [vmem:[%s326 + $0xa8] sm:%s319]
              %343 = vst [vmem:[%s327 + $0xa8] sm:%s319] %v342
              %v344 = vld [vmem:[%s326 + $0xc0] sm:%s319]
              %345 = vst [vmem:[%s327 + $0xc0] sm:%s319] %v344
              %v346 = vld [vmem:[%s326 + $0xd8] sm:%s319]
              %347 = vst [vmem:[%s327 + $0xd8] sm:%s319] %v346
            $region74: #{tpu_custom_call.1} parent=61 // loop_footer
              %s325 = sadd.s32 1, %s321
            $region75: #{tpu_custom_call.1} parent=61 // loop_footer_branch
              %320 = sbr.rel target = $region71
            $region76: #{tpu_custom_call.1} parent=61 // loop_exit
              _
          $region62: #{tpu_custom_call.1} parent=57 // pred_fallthru
            _
          // Predicated region
          $region77: #{tpu_custom_call.1} parent=57 // pred_check
            _
          $region78: #{tpu_custom_call.1} parent=57 // pred_check_branch
            %350 = sbr.rel (0) target = $region80
          $region79: #{tpu_custom_call.1} parent=57 // pred_region
            %351 = vsyncadd %s265, 2880
          $region80: #{tpu_custom_call.1} parent=57 // pred_fallthru
            _
        $region58: #{tpu_custom_call.1} parent=27 // pred_fallthru
          _
        %v352 = vld [vmem:[%s1] sm:$0x7]
        %v353 = vld [vmem:[%s1 + $0x4] sm:$0x7]
        %v354 = vld [vmem:[%s1 + $0x8] sm:$0x7]
        %v355 = vld [vmem:[%s246] sm:$0xff]
        %v356 = vld [vmem:[%s246 + $0x8] sm:$0xff]
        %v357 = vld [vmem:[%s246 + $0x18] sm:$0xff]
        %v358 = vld [vmem:[%s246 + $0x20] sm:$0xff]
        %v359 = vld [vmem:[%s246 + $0x30] sm:$0xff]
        %v360 = vld [vmem:[%s246 + $0x38] sm:$0xff]
        %v361 = vld [vmem:[%s246 + $0x48] sm:$0xff]
        %v362 = vld [vmem:[%s246 + $0x50] sm:$0xff]
        %v363 = vld [vmem:[%s246 + $0x60] sm:$0xff]
        %v364 = vld [vmem:[%s246 + $0x68] sm:$0xff]
        %v365 = vld [vmem:[%s246 + $0x78] sm:$0xff]
        %v366 = vld [vmem:[%s246 + $0x80] sm:$0xff]
        %v367 = vld [vmem:[%s246 + $0x90] sm:$0xff]
        %v368 = vld [vmem:[%s246 + $0x98] sm:$0xff]
        %v369 = vld [vmem:[%s246 + $0xa8] sm:$0xff]
        %v370 = vld [vmem:[%s246 + $0xb0] sm:$0xff]
        %v371 = vperm.slane %v352, 0
        %v372 = vmul.f32 %v355, %v371
        %v373 = vmul.f32 %v356, %v371
        %v374 = vmul.f32 %v357, %v371
        %v375 = vmul.f32 %v358, %v371
        %v376 = vmul.f32 %v359, %v371
        %v377 = vmul.f32 %v360, %v371
        %v378 = vmul.f32 %v361, %v371
        %v379 = vmul.f32 %v362, %v371
        %v380 = vmul.f32 %v363, %v371
        %v381 = vmul.f32 %v364, %v371
        %v382 = vmul.f32 %v365, %v371
        %v383 = vmul.f32 %v366, %v371
        %v384 = vmul.f32 %v367, %v371
        %v385 = vmul.f32 %v368, %v371
        %v386 = vmul.f32 %v369, %v371
        %v387 = vmul.f32 %v370, %v371
        %v388 = vadd.f32 %v372, 0.0
        %v389 = vadd.f32 %v373, 0.0
        %v390 = vadd.f32 %v374, 0.0
        %v391 = vadd.f32 %v375, 0.0
        %v392 = vadd.f32 %v376, 0.0
        %v393 = vadd.f32 %v377, 0.0
        %v394 = vadd.f32 %v378, 0.0
        %v395 = vadd.f32 %v379, 0.0
        %v396 = vadd.f32 %v380, 0.0
        %v397 = vadd.f32 %v381, 0.0
        %v398 = vadd.f32 %v382, 0.0
        %v399 = vadd.f32 %v383, 0.0
        %v400 = vadd.f32 %v384, 0.0
        %v401 = vadd.f32 %v385, 0.0
        %v402 = vadd.f32 %v386, 0.0
        %v403 = vadd.f32 %v387, 0.0
        %v404 = vld [vmem:[%s246 + $0x1] sm:$0xff]
        %v405 = vld [vmem:[%s246 + $0x9] sm:$0xff]
        %v406 = vld [vmem:[%s246 + $0x19] sm:$0xff]
        %v407 = vld [vmem:[%s246 + $0x21] sm:$0xff]
        %v408 = vld [vmem:[%s246 + $0x31] sm:$0xff]
        %v409 = vld [vmem:[%s246 + $0x39] sm:$0xff]
        %v410 = vld [vmem:[%s246 + $0x49] sm:$0xff]
        %v411 = vld [vmem:[%s246 + $0x51] sm:$0xff]
        %v412 = vld [vmem:[%s246 + $0x61] sm:$0xff]
        %v413 = vld [vmem:[%s246 + $0x69] sm:$0xff]
        %v414 = vld [vmem:[%s246 + $0x79] sm:$0xff]
        %v415 = vld [vmem:[%s246 + $0x81] sm:$0xff]
        %v416 = vld [vmem:[%s246 + $0x91] sm:$0xff]
        %v417 = vld [vmem:[%s246 + $0x99] sm:$0xff]
        %v418 = vld [vmem:[%s246 + $0xa9] sm:$0xff]
        %v419 = vld [vmem:[%s246 + $0xb1] sm:$0xff]
        %v420 = vperm.slane %v352, 1
        %v421 = vmul.f32 %v404, %v420
        %v422 = vmul.f32 %v405, %v420
        %v423 = vmul.f32 %v406, %v420
        %v424 = vmul.f32 %v407, %v420
        %v425 = vmul.f32 %v408, %v420
        %v426 = vmul.f32 %v409, %v420
        %v427 = vmul.f32 %v410, %v420
        %v428 = vmul.f32 %v411, %v420
        %v429 = vmul.f32 %v412, %v420
        %v430 = vmul.f32 %v413, %v420
        %v431 = vmul.f32 %v414, %v420
        %v432 = vmul.f32 %v415, %v420
        %v433 = vmul.f32 %v416, %v420
        %v434 = vmul.f32 %v417, %v420
        %v435 = vmul.f32 %v418, %v420
        %v436 = vmul.f32 %v419, %v420
        %v437 = vadd.f32 %v388, %v421
        %v438 = vadd.f32 %v389, %v422
        %v439 = vadd.f32 %v390, %v423
        %v440 = vadd.f32 %v391, %v424
        %v441 = vadd.f32 %v392, %v425
        %v442 = vadd.f32 %v393, %v426
        %v443 = vadd.f32 %v394, %v427
        %v444 = vadd.f32 %v395, %v428
        %v445 = vadd.f32 %v396, %v429
        %v446 = vadd.f32 %v397, %v430
        %v447 = vadd.f32 %v398, %v431
        %v448 = vadd.f32 %v399, %v432
        %v449 = vadd.f32 %v400, %v433
        %v450 = vadd.f32 %v401, %v434
        %v451 = vadd.f32 %v402, %v435
        %v452 = vadd.f32 %v403, %v436
        %v453 = vld [vmem:[%s246 + $0x2] sm:$0xff]
        %v454 = vld [vmem:[%s246 + $0xa] sm:$0xff]
        %v455 = vld [vmem:[%s246 + $0x1a] sm:$0xff]
        %v456 = vld [vmem:[%s246 + $0x22] sm:$0xff]
        %v457 = vld [vmem:[%s246 + $0x32] sm:$0xff]
        %v458 = vld [vmem:[%s246 + $0x3a] sm:$0xff]
        %v459 = vld [vmem:[%s246 + $0x4a] sm:$0xff]
        %v460 = vld [vmem:[%s246 + $0x52] sm:$0xff]
        %v461 = vld [vmem:[%s246 + $0x62] sm:$0xff]
        %v462 = vld [vmem:[%s246 + $0x6a] sm:$0xff]
        %v463 = vld [vmem:[%s246 + $0x7a] sm:$0xff]
        %v464 = vld [vmem:[%s246 + $0x82] sm:$0xff]
        %v465 = vld [vmem:[%s246 + $0x92] sm:$0xff]
        %v466 = vld [vmem:[%s246 + $0x9a] sm:$0xff]
        %v467 = vld [vmem:[%s246 + $0xaa] sm:$0xff]
        %v468 = vld [vmem:[%s246 + $0xb2] sm:$0xff]
        %v469 = vperm.slane %v352, 2
        %v470 = vmul.f32 %v453, %v469
        %v471 = vmul.f32 %v454, %v469
        %v472 = vmul.f32 %v455, %v469
        %v473 = vmul.f32 %v456, %v469
        %v474 = vmul.f32 %v457, %v469
        %v475 = vmul.f32 %v458, %v469
        %v476 = vmul.f32 %v459, %v469
        %v477 = vmul.f32 %v460, %v469
        %v478 = vmul.f32 %v461, %v469
        %v479 = vmul.f32 %v462, %v469
        %v480 = vmul.f32 %v463, %v469
        %v481 = vmul.f32 %v464, %v469
        %v482 = vmul.f32 %v465, %v469
        %v483 = vmul.f32 %v466, %v469
        %v484 = vmul.f32 %v467, %v469
        %v485 = vmul.f32 %v468, %v469
        %v486 = vadd.f32 %v437, %v470
        %v487 = vadd.f32 %v438, %v471
        %v488 = vadd.f32 %v439, %v472
        %v489 = vadd.f32 %v440, %v473
        %v490 = vadd.f32 %v441, %v474
        %v491 = vadd.f32 %v442, %v475
        %v492 = vadd.f32 %v443, %v476
        %v493 = vadd.f32 %v444, %v477
        %v494 = vadd.f32 %v445, %v478
        %v495 = vadd.f32 %v446, %v479
        %v496 = vadd.f32 %v447, %v480
        %v497 = vadd.f32 %v448, %v481
        %v498 = vadd.f32 %v449, %v482
        %v499 = vadd.f32 %v450, %v483
        %v500 = vadd.f32 %v451, %v484
        %v501 = vadd.f32 %v452, %v485
        %s502 = scalar_lea.vmem %s246, 24 [#allocation2]
        %v503 = vld [vmem:[%s502] sm:$0xff]
        %v504 = vld [vmem:[%s502 + $0x8] sm:$0xff]
        %v505 = vld [vmem:[%s502 + $0x18] sm:$0xff]
        %v506 = vld [vmem:[%s502 + $0x20] sm:$0xff]
        %v507 = vld [vmem:[%s502 + $0x30] sm:$0xff]
        %v508 = vld [vmem:[%s502 + $0x38] sm:$0xff]
        %v509 = vld [vmem:[%s502 + $0x48] sm:$0xff]
        %v510 = vld [vmem:[%s502 + $0x50] sm:$0xff]
        %v511 = vld [vmem:[%s502 + $0x60] sm:$0xff]
        %v512 = vld [vmem:[%s502 + $0x68] sm:$0xff]
        %v513 = vld [vmem:[%s502 + $0x78] sm:$0xff]
        %v514 = vld [vmem:[%s502 + $0x80] sm:$0xff]
        %v515 = vld [vmem:[%s502 + $0x90] sm:$0xff]
        %v516 = vld [vmem:[%s502 + $0x98] sm:$0xff]
        %v517 = vld [vmem:[%s502 + $0xa8] sm:$0xff]
        %v518 = vld [vmem:[%s502 + $0xb0] sm:$0xff]
        %v519 = vperm.slane %v353, 0
        %v520 = vmul.f32 %v503, %v519
        %v521 = vmul.f32 %v504, %v519
        %v522 = vmul.f32 %v505, %v519
        %v523 = vmul.f32 %v506, %v519
        %v524 = vmul.f32 %v507, %v519
        %v525 = vmul.f32 %v508, %v519
        %v526 = vmul.f32 %v509, %v519
        %v527 = vmul.f32 %v510, %v519
        %v528 = vmul.f32 %v511, %v519
        %v529 = vmul.f32 %v512, %v519
        %v530 = vmul.f32 %v513, %v519
        %v531 = vmul.f32 %v514, %v519
        %v532 = vmul.f32 %v515, %v519
        %v533 = vmul.f32 %v516, %v519
        %v534 = vmul.f32 %v517, %v519
        %v535 = vmul.f32 %v518, %v519
        %v536 = vadd.f32 %v486, %v520
        %v537 = vadd.f32 %v487, %v521
        %v538 = vadd.f32 %v488, %v522
        %v539 = vadd.f32 %v489, %v523
        %v540 = vadd.f32 %v490, %v524
        %v541 = vadd.f32 %v491, %v525
        %v542 = vadd.f32 %v492, %v526
        %v543 = vadd.f32 %v493, %v527
        %v544 = vadd.f32 %v494, %v528
        %v545 = vadd.f32 %v495, %v529
        %v546 = vadd.f32 %v496, %v530
        %v547 = vadd.f32 %v497, %v531
        %v548 = vadd.f32 %v498, %v532
        %v549 = vadd.f32 %v499, %v533
        %v550 = vadd.f32 %v500, %v534
        %v551 = vadd.f32 %v501, %v535
        %v552 = vld [vmem:[%s502 + $0x1] sm:$0xff]
        %v553 = vld [vmem:[%s502 + $0x9] sm:$0xff]
        %v554 = vld [vmem:[%s502 + $0x19] sm:$0xff]
        %v555 = vld [vmem:[%s502 + $0x21] sm:$0xff]
        %v556 = vld [vmem:[%s502 + $0x31] sm:$0xff]
        %v557 = vld [vmem:[%s502 + $0x39] sm:$0xff]
        %v558 = vld [vmem:[%s502 + $0x49] sm:$0xff]
        %v559 = vld [vmem:[%s502 + $0x51] sm:$0xff]
        %v560 = vld [vmem:[%s502 + $0x61] sm:$0xff]
        %v561 = vld [vmem:[%s502 + $0x69] sm:$0xff]
        %v562 = vld [vmem:[%s502 + $0x79] sm:$0xff]
        %v563 = vld [vmem:[%s502 + $0x81] sm:$0xff]
        %v564 = vld [vmem:[%s502 + $0x91] sm:$0xff]
        %v565 = vld [vmem:[%s502 + $0x99] sm:$0xff]
        %v566 = vld [vmem:[%s502 + $0xa9] sm:$0xff]
        %v567 = vld [vmem:[%s502 + $0xb1] sm:$0xff]
        %v568 = vperm.slane %v353, 1
        %v569 = vmul.f32 %v552, %v568
        %v570 = vmul.f32 %v553, %v568
        %v571 = vmul.f32 %v554, %v568
        %v572 = vmul.f32 %v555, %v568
        %v573 = vmul.f32 %v556, %v568
        %v574 = vmul.f32 %v557, %v568
        %v575 = vmul.f32 %v558, %v568
        %v576 = vmul.f32 %v559, %v568
        %v577 = vmul.f32 %v560, %v568
        %v578 = vmul.f32 %v561, %v568
        %v579 = vmul.f32 %v562, %v568
        %v580 = vmul.f32 %v563, %v568
        %v581 = vmul.f32 %v564, %v568
        %v582 = vmul.f32 %v565, %v568
        %v583 = vmul.f32 %v566, %v568
        %v584 = vmul.f32 %v567, %v568
        %v585 = vadd.f32 %v536, %v569
        %v586 = vadd.f32 %v537, %v570
        %v587 = vadd.f32 %v538, %v571
        %v588 = vadd.f32 %v539, %v572
        %v589 = vadd.f32 %v540, %v573
        %v590 = vadd.f32 %v541, %v574
        %v591 = vadd.f32 %v542, %v575
        %v592 = vadd.f32 %v543, %v576
        %v593 = vadd.f32 %v544, %v577
        %v594 = vadd.f32 %v545, %v578
        %v595 = vadd.f32 %v546, %v579
        %v596 = vadd.f32 %v547, %v580
        %v597 = vadd.f32 %v548, %v581
        %v598 = vadd.f32 %v549, %v582
        %v599 = vadd.f32 %v550, %v583
        %v600 = vadd.f32 %v551, %v584
        %v601 = vld [vmem:[%s502 + $0x2] sm:$0xff]
        %v602 = vld [vmem:[%s502 + $0xa] sm:$0xff]
        %v603 = vld [vmem:[%s502 + $0x1a] sm:$0xff]
        %v604 = vld [vmem:[%s502 + $0x22] sm:$0xff]
        %v605 = vld [vmem:[%s502 + $0x32] sm:$0xff]
        %v606 = vld [vmem:[%s502 + $0x3a] sm:$0xff]
        %v607 = vld [vmem:[%s502 + $0x4a] sm:$0xff]
        %v608 = vld [vmem:[%s502 + $0x52] sm:$0xff]
        %v609 = vld [vmem:[%s502 + $0x62] sm:$0xff]
        %v610 = vld [vmem:[%s502 + $0x6a] sm:$0xff]
        %v611 = vld [vmem:[%s502 + $0x7a] sm:$0xff]
        %v612 = vld [vmem:[%s502 + $0x82] sm:$0xff]
        %v613 = vld [vmem:[%s502 + $0x92] sm:$0xff]
        %v614 = vld [vmem:[%s502 + $0x9a] sm:$0xff]
        %v615 = vld [vmem:[%s502 + $0xaa] sm:$0xff]
        %v616 = vld [vmem:[%s502 + $0xb2] sm:$0xff]
        %v617 = vperm.slane %v353, 2
        %v618 = vmul.f32 %v601, %v617
        %v619 = vmul.f32 %v602, %v617
        %v620 = vmul.f32 %v603, %v617
        %v621 = vmul.f32 %v604, %v617
        %v622 = vmul.f32 %v605, %v617
        %v623 = vmul.f32 %v606, %v617
        %v624 = vmul.f32 %v607, %v617
        %v625 = vmul.f32 %v608, %v617
        %v626 = vmul.f32 %v609, %v617
        %v627 = vmul.f32 %v610, %v617
        %v628 = vmul.f32 %v611, %v617
        %v629 = vmul.f32 %v612, %v617
        %v630 = vmul.f32 %v613, %v617
        %v631 = vmul.f32 %v614, %v617
        %v632 = vmul.f32 %v615, %v617
        %v633 = vmul.f32 %v616, %v617
        %v634 = vadd.f32 %v585, %v618
        %v635 = vadd.f32 %v586, %v619
        %v636 = vadd.f32 %v587, %v620
        %v637 = vadd.f32 %v588, %v621
        %v638 = vadd.f32 %v589, %v622
        %v639 = vadd.f32 %v590, %v623
        %v640 = vadd.f32 %v591, %v624
        %v641 = vadd.f32 %v592, %v625
        %v642 = vadd.f32 %v593, %v626
        %v643 = vadd.f32 %v594, %v627
        %v644 = vadd.f32 %v595, %v628
        %v645 = vadd.f32 %v596, %v629
        %v646 = vadd.f32 %v597, %v630
        %v647 = vadd.f32 %v598, %v631
        %v648 = vadd.f32 %v599, %v632
        %v649 = vadd.f32 %v600, %v633
        %s650 = scalar_lea.vmem %s246, 48 [#allocation2]
        %v651 = vld [vmem:[%s650] sm:$0xff]
        %v652 = vld [vmem:[%s650 + $0x8] sm:$0xff]
        %v653 = vld [vmem:[%s650 + $0x18] sm:$0xff]
        %v654 = vld [vmem:[%s650 + $0x20] sm:$0xff]
        %v655 = vld [vmem:[%s650 + $0x30] sm:$0xff]
        %v656 = vld [vmem:[%s650 + $0x38] sm:$0xff]
        %v657 = vld [vmem:[%s650 + $0x48] sm:$0xff]
        %v658 = vld [vmem:[%s650 + $0x50] sm:$0xff]
        %v659 = vld [vmem:[%s650 + $0x60] sm:$0xff]
        %v660 = vld [vmem:[%s650 + $0x68] sm:$0xff]
        %v661 = vld [vmem:[%s650 + $0x78] sm:$0xff]
        %v662 = vld [vmem:[%s650 + $0x80] sm:$0xff]
        %v663 = vld [vmem:[%s650 + $0x90] sm:$0xff]
        %v664 = vld [vmem:[%s650 + $0x98] sm:$0xff]
        %v665 = vld [vmem:[%s650 + $0xa8] sm:$0xff]
        %v666 = vld [vmem:[%s650 + $0xb0] sm:$0xff]
        %v667 = vperm.slane %v354, 0
        %v668 = vmul.f32 %v651, %v667
        %v669 = vmul.f32 %v652, %v667
        %v670 = vmul.f32 %v653, %v667
        %v671 = vmul.f32 %v654, %v667
        %v672 = vmul.f32 %v655, %v667
        %v673 = vmul.f32 %v656, %v667
        %v674 = vmul.f32 %v657, %v667
        %v675 = vmul.f32 %v658, %v667
        %v676 = vmul.f32 %v659, %v667
        %v677 = vmul.f32 %v660, %v667
        %v678 = vmul.f32 %v661, %v667
        %v679 = vmul.f32 %v662, %v667
        %v680 = vmul.f32 %v663, %v667
        %v681 = vmul.f32 %v664, %v667
        %v682 = vmul.f32 %v665, %v667
        %v683 = vmul.f32 %v666, %v667
        %v684 = vadd.f32 %v634, %v668
        %v685 = vadd.f32 %v635, %v669
        %v686 = vadd.f32 %v636, %v670
        %v687 = vadd.f32 %v637, %v671
        %v688 = vadd.f32 %v638, %v672
        %v689 = vadd.f32 %v639, %v673
        %v690 = vadd.f32 %v640, %v674
        %v691 = vadd.f32 %v641, %v675
        %v692 = vadd.f32 %v642, %v676
        %v693 = vadd.f32 %v643, %v677
        %v694 = vadd.f32 %v644, %v678
        %v695 = vadd.f32 %v645, %v679
        %v696 = vadd.f32 %v646, %v680
        %v697 = vadd.f32 %v647, %v681
        %v698 = vadd.f32 %v648, %v682
        %v699 = vadd.f32 %v649, %v683
        %v700 = vld [vmem:[%s650 + $0x1] sm:$0xff]
        %v701 = vld [vmem:[%s650 + $0x9] sm:$0xff]
        %v702 = vld [vmem:[%s650 + $0x19] sm:$0xff]
        %v703 = vld [vmem:[%s650 + $0x21] sm:$0xff]
        %v704 = vld [vmem:[%s650 + $0x31] sm:$0xff]
        %v705 = vld [vmem:[%s650 + $0x39] sm:$0xff]
        %v706 = vld [vmem:[%s650 + $0x49] sm:$0xff]
        %v707 = vld [vmem:[%s650 + $0x51] sm:$0xff]
        %v708 = vld [vmem:[%s650 + $0x61] sm:$0xff]
        %v709 = vld [vmem:[%s650 + $0x69] sm:$0xff]
        %v710 = vld [vmem:[%s650 + $0x79] sm:$0xff]
        %v711 = vld [vmem:[%s650 + $0x81] sm:$0xff]
        %v712 = vld [vmem:[%s650 + $0x91] sm:$0xff]
        %v713 = vld [vmem:[%s650 + $0x99] sm:$0xff]
        %v714 = vld [vmem:[%s650 + $0xa9] sm:$0xff]
        %v715 = vld [vmem:[%s650 + $0xb1] sm:$0xff]
        %v716 = vperm.slane %v354, 1
        %v717 = vmul.f32 %v700, %v716
        %v718 = vmul.f32 %v701, %v716
        %v719 = vmul.f32 %v702, %v716
        %v720 = vmul.f32 %v703, %v716
        %v721 = vmul.f32 %v704, %v716
        %v722 = vmul.f32 %v705, %v716
        %v723 = vmul.f32 %v706, %v716
        %v724 = vmul.f32 %v707, %v716
        %v725 = vmul.f32 %v708, %v716
        %v726 = vmul.f32 %v709, %v716
        %v727 = vmul.f32 %v710, %v716
        %v728 = vmul.f32 %v711, %v716
        %v729 = vmul.f32 %v712, %v716
        %v730 = vmul.f32 %v713, %v716
        %v731 = vmul.f32 %v714, %v716
        %v732 = vmul.f32 %v715, %v716
        %v733 = vadd.f32 %v684, %v717
        %v734 = vadd.f32 %v685, %v718
        %v735 = vadd.f32 %v686, %v719
        %v736 = vadd.f32 %v687, %v720
        %v737 = vadd.f32 %v688, %v721
        %v738 = vadd.f32 %v689, %v722
        %v739 = vadd.f32 %v690, %v723
        %v740 = vadd.f32 %v691, %v724
        %v741 = vadd.f32 %v692, %v725
        %v742 = vadd.f32 %v693, %v726
        %v743 = vadd.f32 %v694, %v727
        %v744 = vadd.f32 %v695, %v728
        %v745 = vadd.f32 %v696, %v729
        %v746 = vadd.f32 %v697, %v730
        %v747 = vadd.f32 %v698, %v731
        %v748 = vadd.f32 %v699, %v732
        %v749 = vld [vmem:[%s650 + $0x2] sm:$0xff]
        %v750 = vld [vmem:[%s650 + $0xa] sm:$0xff]
        %v751 = vld [vmem:[%s650 + $0x1a] sm:$0xff]
        %v752 = vld [vmem:[%s650 + $0x22] sm:$0xff]
        %v753 = vld [vmem:[%s650 + $0x32] sm:$0xff]
        %v754 = vld [vmem:[%s650 + $0x3a] sm:$0xff]
        %v755 = vld [vmem:[%s650 + $0x4a] sm:$0xff]
        %v756 = vld [vmem:[%s650 + $0x52] sm:$0xff]
        %v757 = vld [vmem:[%s650 + $0x62] sm:$0xff]
        %v758 = vld [vmem:[%s650 + $0x6a] sm:$0xff]
        %v759 = vld [vmem:[%s650 + $0x7a] sm:$0xff]
        %v760 = vld [vmem:[%s650 + $0x82] sm:$0xff]
        %v761 = vld [vmem:[%s650 + $0x92] sm:$0xff]
        %v762 = vld [vmem:[%s650 + $0x9a] sm:$0xff]
        %v763 = vld [vmem:[%s650 + $0xaa] sm:$0xff]
        %v764 = vld [vmem:[%s650 + $0xb2] sm:$0xff]
        %v765 = vperm.slane %v354, 2
        %v766 = vmul.f32 %v749, %v765
        %v767 = vmul.f32 %v750, %v765
        %v768 = vmul.f32 %v751, %v765
        %v769 = vmul.f32 %v752, %v765
        %v770 = vmul.f32 %v753, %v765
        %v771 = vmul.f32 %v754, %v765
        %v772 = vmul.f32 %v755, %v765
        %v773 = vmul.f32 %v756, %v765
        %v774 = vmul.f32 %v757, %v765
        %v775 = vmul.f32 %v758, %v765
        %v776 = vmul.f32 %v759, %v765
        %v777 = vmul.f32 %v760, %v765
        %v778 = vmul.f32 %v761, %v765
        %v779 = vmul.f32 %v762, %v765
        %v780 = vmul.f32 %v763, %v765
        %v781 = vmul.f32 %v764, %v765
        %v782 = vadd.f32 %v733, %v766
        %v783 = vadd.f32 %v734, %v767
        %v784 = vadd.f32 %v735, %v768
        %v785 = vadd.f32 %v736, %v769
        %v786 = vadd.f32 %v737, %v770
        %v787 = vadd.f32 %v738, %v771
        %v788 = vadd.f32 %v739, %v772
        %v789 = vadd.f32 %v740, %v773
        %v790 = vadd.f32 %v741, %v774
        %v791 = vadd.f32 %v742, %v775
        %v792 = vadd.f32 %v743, %v776
        %v793 = vadd.f32 %v744, %v777
        %v794 = vadd.f32 %v745, %v778
        %v795 = vadd.f32 %v746, %v779
        %v796 = vadd.f32 %v747, %v780
        %v797 = vadd.f32 %v748, %v781
        %v798 = vld [vmem:[%s2] sm:$0xff]
        %v799 = vld [vmem:[%s2 + $0x8] sm:$0xff]
        %v800 = vld [vmem:[%s2 + $0x10] sm:$0xff]
        %v801 = vld [vmem:[%s2 + $0x18] sm:$0xff]
        %v802 = vld [vmem:[%s2 + $0x20] sm:$0xff]
        %v803 = vld [vmem:[%s2 + $0x28] sm:$0xff]
        %v804 = vld [vmem:[%s2 + $0x30] sm:$0xff]
        %v805 = vld [vmem:[%s2 + $0x38] sm:$0xff]
        %v806 = vld [vmem:[%s2 + $0x40] sm:$0xff]
        %v807 = vld [vmem:[%s2 + $0x48] sm:$0xff]
        %v808 = vld [vmem:[%s2 + $0x50] sm:$0xff]
        %v809 = vld [vmem:[%s2 + $0x58] sm:$0xff]
        %v810 = vld [vmem:[%s2 + $0x60] sm:$0xff]
        %v811 = vld [vmem:[%s2 + $0x68] sm:$0xff]
        %v812 = vld [vmem:[%s2 + $0x70] sm:$0xff]
        %v813 = vld [vmem:[%s2 + $0x78] sm:$0xff]
        %814 = vmatpush.msra.mxu0 %v813
        %815 = vmatpush.msra.mxu0 %v812
        %816 = vmatpush.msra.mxu0 %v811
        %817 = vmatpush.msra.mxu0 %v810
        %818 = vmatpush.msra.mxu0 %v809
        %819 = vmatpush.msra.mxu0 %v808
        %820 = vmatpush.msra.mxu0 %v807
        %821 = vmatpush.msra.mxu0 %v806
        %822 = vmatpush.msra.mxu0 %v805
        %823 = vmatpush.msra.mxu0 %v804
        %824 = vmatpush.msra.mxu0 %v803
        %825 = vmatpush.msra.mxu0 %v802
        %826 = vmatpush.msra.mxu0 %v801
        %827 = vmatpush.msra.mxu0 %v800
        %828 = vmatpush.msra.mxu0 %v799
        %829 = vmatpush.msra.mxu0 %v798
        %830 = vmatmul.f32.gmra.mxu0 %v782
        %v831 = vpop.f32.mrf.mxu0
        %v832 = vadd.f32 0.0, %v831
        %833 = vmatmul.f32.gmra.mxu0 %v783
        %v834 = vpop.f32.mrf.mxu0
        %v835 = vadd.f32 0.0, %v834
        %836 = vmatmul.f32.gmra.mxu0 %v784
        %v837 = vpop.f32.mrf.mxu0
        %v838 = vadd.f32 0.0, %v837
        %839 = vmatmul.f32.gmra.mxu0 %v785
        %v840 = vpop.f32.mrf.mxu0
        %v841 = vadd.f32 0.0, %v840
        %842 = vmatmul.f32.gmra.mxu0 %v786
        %v843 = vpop.f32.mrf.mxu0
        %v844 = vadd.f32 0.0, %v843
        %845 = vmatmul.f32.gmra.mxu0 %v787
        %v846 = vpop.f32.mrf.mxu0
        %v847 = vadd.f32 0.0, %v846
        %848 = vmatmul.f32.gmra.mxu0 %v788
        %v849 = vpop.f32.mrf.mxu0
        %v850 = vadd.f32 0.0, %v849
        %851 = vmatmul.f32.gmra.mxu0 %v789
        %v852 = vpop.f32.mrf.mxu0
        %v853 = vadd.f32 0.0, %v852
        %854 = vmatmul.f32.gmra.mxu0 %v790
        %v855 = vpop.f32.mrf.mxu0
        %v856 = vadd.f32 0.0, %v855
        %857 = vmatmul.f32.gmra.mxu0 %v791
        %v858 = vpop.f32.mrf.mxu0
        %v859 = vadd.f32 0.0, %v858
        %860 = vmatmul.f32.gmra.mxu0 %v792
        %v861 = vpop.f32.mrf.mxu0
        %v862 = vadd.f32 0.0, %v861
        %863 = vmatmul.f32.gmra.mxu0 %v793
        %v864 = vpop.f32.mrf.mxu0
        %v865 = vadd.f32 0.0, %v864
        %866 = vmatmul.f32.gmra.mxu0 %v794
        %v867 = vpop.f32.mrf.mxu0
        %v868 = vadd.f32 0.0, %v867
        %869 = vmatmul.f32.gmra.mxu0 %v795
        %v870 = vpop.f32.mrf.mxu0
        %v871 = vadd.f32 0.0, %v870
        %872 = vmatmul.f32.gmra.mxu0 %v796
        %v873 = vpop.f32.mrf.mxu0
        %v874 = vadd.f32 0.0, %v873
        %875 = vmatmul.f32.gmra.mxu0 %v797
        %v876 = vpop.f32.mrf.mxu0
        %v877 = vadd.f32 0.0, %v876
        %878 = vdwg.mxu0
        %879 = vst [vmem:[%s136] sm:$0xff] %v832
        %880 = vst [vmem:[%s136 + $0x8] sm:$0xff] %v835
        %881 = vst [vmem:[%s136 + $0x10] sm:$0xff] %v838
        %882 = vst [vmem:[%s136 + $0x18] sm:$0xff] %v841
        %883 = vst [vmem:[%s136 + $0x20] sm:$0xff] %v844
        %884 = vst [vmem:[%s136 + $0x28] sm:$0xff] %v847
        %885 = vst [vmem:[%s136 + $0x30] sm:$0xff] %v850
        %886 = vst [vmem:[%s136 + $0x38] sm:$0xff] %v853
        %887 = vst [vmem:[%s136 + $0x40] sm:$0xff] %v856
        %888 = vst [vmem:[%s136 + $0x48] sm:$0xff] %v859
        %889 = vst [vmem:[%s136 + $0x50] sm:$0xff] %v862
        %890 = vst [vmem:[%s136 + $0x58] sm:$0xff] %v865
        %891 = vst [vmem:[%s136 + $0x60] sm:$0xff] %v868
        %892 = vst [vmem:[%s136 + $0x68] sm:$0xff] %v871
        %893 = vst [vmem:[%s136 + $0x70] sm:$0xff] %v874
        %894 = vst [vmem:[%s136 + $0x78] sm:$0xff] %v877
        %s895 = sand.u32 %s81, 1
        %s896 = scalar_lea.sflag [#allocation5], %s895
        %s897 = sand.u32 %s81, 1
        %s898 = smul.addr %s897, 128
        %s899 = scalar_lea.vmem [#allocation4], %s898
        // Predicated region
        $region81: #{tpu_custom_call.1} parent=27 // pred_check
          %p900 = pneg %p91
        $region82: #{tpu_custom_call.1} parent=27 // pred_check_branch
          %902 = sbr.rel (%p900) target = $region84
        $region83: #{tpu_custom_call.1} parent=27 // pred_region
          %s903 = smul.u32 8, %s22
          %905 = vsyncadd %s896, 0
          %s906 = smul.addr %s903, 2
          %s907 = smul.addr %s21, 32
          %s908 = sadd.s32 %s906, %s907
          %s909 = smul.addr %s908, 8
          %s910 = scalar_lea.hbm %s3, %s909
          %s911 = sshll.u32 %s899, 4
          %s912 = int_to_ptr.vmem [resolvable:$true] %s911
          %s913 = sshll.u32 %s910, 4
          %s914 = int_to_ptr.hbm [resolvable:$true] %s913
          %919 = dma.vmem_to_hbm [thread:$0]  %s912, 2048, %s914, %s896, 128, 128, 8
        $region84: #{tpu_custom_call.1} parent=27 // pred_fallthru
          _
      $region28: #{tpu_custom_call.1} parent=5 // pred_fallthru
        _
      %p920 = scmp.le.s32.totalorder 2, %s12
      // Predicated region
      $region85: #{tpu_custom_call.1} parent=5 // pred_check
        %p921 = pneg %p920
      $region86: #{tpu_custom_call.1} parent=5 // pred_check_branch
        %923 = sbr.rel (%p921) target = $region88
      $region87: #{tpu_custom_call.1} parent=5 // pred_region
        %s924 = ssub.s32 %s12, 2
        // Predicated region
        $region89: #{tpu_custom_call.1} parent=87 // pred_check
          %p925 = pneg %p97
        $region90: #{tpu_custom_call.1} parent=87 // pred_check_branch
          %927 = sbr.rel (%p925) target = $region92
        $region91: #{tpu_custom_call.1} parent=87 // pred_region
          %s928 = sand.u32 %s82, 1
          %s929 = scalar_lea.sflag [#allocation5], %s928
          %s930 = sand.u32 %s82, 1
          %s931 = smul.addr %s930, 128
          %s932 = scalar_lea.vmem [#allocation4], %s931
          %934 = dma.done %s929, 2048
        $region92: #{tpu_custom_call.1} parent=87 // pred_fallthru
          _
      $region88: #{tpu_custom_call.1} parent=5 // pred_fallthru
        _
    $region6: #{tpu_custom_call.1} parent=1 // loop_footer
      %s16 = sadd.s32 1, %s12
    $region7: #{tpu_custom_call.1} parent=1 // loop_footer_branch
      %11 = sbr.rel target = $region3
    $region8: #{tpu_custom_call.1} parent=1 // loop_exit
      _
    %935 = vsyncpa [#allocation5], 1
    %s936 = scalar_lea.sflag [#allocation5], 1
    %937 = vsyncpa %s936, 1
  %938 = vsyncmov [#allocation3]
  %s939 = vpop.sfrf %938
  %p940 = scmp.eq.s32.totalorder %s939, 0
  %p941 = pneg %p940
  %943 = shalt.err (%p941)
  %s944 = scalar_lea.sflag [#allocation3], 1
  %945 = vsyncmov %s944
  %s946 = vpop.sfrf %945
  %p947 = scmp.eq.s32.totalorder %s946, 0
  %p948 = pneg %p947
  %950 = shalt.err (%p948)

</llo_original>
